<compile_context>
chip_gen: v7x
topology: tpu7x:2x2x1
jax: 0.10.0
libtpu: 0.0.40
codegen_flags: <defaults>
</compile_context>

<pallas_src>
import functools

import jax
import jax.numpy as jnp
import numpy as np
from jax.experimental import pallas as pl
from jax.experimental.pallas import tpu as pltpu


# -----------------------------------------------------------------------------
# WN receptive-field geometry
# -----------------------------------------------------------------------------
def _wn_geometry(kernel_size, dilation_rate, n_layers):
    dils = [dilation_rate ** i for i in range(n_layers)]
    pads = [((kernel_size - 1) * d) // 2 for d in dils]
    halo = sum(pads)                                  # one-sided total halo
    lmarg = max(pads)                                 # left zero margin
    rmarg = max((kernel_size - 1) * d - p for d, p in zip(dils, pads))
    return dils, pads, halo, lmarg, rmarg


# -----------------------------------------------------------------------------
# Fused kernel body.  Grid = (batch, time_tile, layer).
# Internal layout: channels on sublanes, time on lanes.
# -----------------------------------------------------------------------------
def make_fused_encoder_kernel(*, n_layers, kernel_size, dilation_rate,
                              hidden, tile_t, halo, lmarg, rmarg):
    K = kernel_size
    H = hidden
    dils, pads, _, _, _ = _wn_geometry(K, dilation_rate, n_layers)
    W = tile_t + 2 * halo                 # haloed window the WN stack runs on
    uniform = len(set(dils)) == 1         # real so-vits flows: dilation_rate=1

    def kernel(len_ref,                       # SMEM prefetch: (B,) int32
               x_ref, noise_ref,              # (1,1,Cin,W) bf16 ; (1,C,TILE) f32
               pre_w_ref, pre_b_ref,          # (H,Cin) bf16 ; (H,1) f32
               in_w_ref, in_b_ref,            # (1,2H,K*H) bf16 ; (1,2H,1) f32
               rs_w_ref, rs_b_ref,            # (1,2H,H) bf16 ; (1,2H,1) f32
               pwm_ref, pbm_ref,              # (C,H) bf16 ; (C,1) f32  (m half)
               pws_ref, pbs_ref,              # (C,H) bf16 ; (C,1) f32  (logs)
               z_ref, m_ref, logs_ref, mask_ref,
               hb_ref, hf_ref, skip_ref, xstack_ref):
        b = pl.program_id(0)
        t = pl.program_id(1)
        l = pl.program_id(2)
        n_l = pl.num_programs(2)
        length = len_ref[b]

        # Mask over the haloed window from global time positions.  Hoisted:
        # computed once per grid step and reused for every masked multiply.
        gpos = (t * tile_t - halo
                + jax.lax.broadcasted_iota(jnp.int32, (1, W), 1))
        mask_row = jnp.where((gpos >= 0) & (gpos < length), 1.0, 0.0)   # (1,W)
        mask_hw = jnp.broadcast_to(mask_row, (H, W))                    # (H,W)

        # ---- first layer step: scratch init + pre 1x1 conv ------------------
        @pl.when(l == 0)
        def _():
            hb_ref[...] = jnp.zeros_like(hb_ref)     # keep conv margins zero
            skip_ref[...] = jnp.zeros_like(skip_ref)
            h0 = jnp.dot(pre_w_ref[...], x_ref[0, 0],
                         preferred_element_type=jnp.float32)            # (H,W)
            h0 = (h0 + pre_b_ref[...]) * mask_hw
            hf_ref[...] = h0
            hb_ref[:, lmarg:lmarg + W] = h0.astype(jnp.bfloat16)

        # ---- im2col tap stack for THIS layer, built directly in bf16 --------
        hwin = hb_ref[...]                            # (H, lmarg+W+rmarg) bf16

        def build_stack(d, pad):
            base = lmarg - pad
            return jnp.concatenate(
                [hwin[:, base + j * d: base + j * d + W] for j in range(K)],
                axis=0)                               # (K*H, W) bf16

        if uniform:
            xstack_ref[...] = build_stack(dils[0], pads[0])
        else:
            for i in range(n_layers):
                @pl.when(l == i)
                def _(d=dils[i], pad=pads[i]):
                    xstack_ref[...] = build_stack(d, pad)

        # ---- dilated gated conv + res/skip 1x1 conv (this layer's weights) --
        acc = jnp.dot(in_w_ref[0], xstack_ref[...],
                      preferred_element_type=jnp.float32) + in_b_ref[0]  # (2H,W)
        acts = jnp.tanh(acc[:H]) * jax.nn.sigmoid(acc[H:])               # (H,W)
        rs = jnp.dot(rs_w_ref[0], acts.astype(jnp.bfloat16),
                     preferred_element_type=jnp.float32) + rs_b_ref[0]   # (2H,W)

        @pl.when(l < n_l - 1)
        def _():
            h_new = (hf_ref[...] + rs[:H]) * mask_hw
            hf_ref[...] = h_new
            hb_ref[:, lmarg:lmarg + W] = h_new.astype(jnp.bfloat16)
            skip_ref[...] = skip_ref[...] + rs[H:]

        # ---- last layer step: proj + split + sample + lane-dense stores -----
        @pl.when(l == n_l - 1)
        def _():
            # last res_skip conv only feeds the skip path (rows [:H])
            skip_fin = (skip_ref[...] + rs[:H]) * mask_hw                # (H,W)
            sk = skip_fin[:, halo:halo + tile_t].astype(jnp.bfloat16)    # center
            cm = mask_row[:, halo:halo + tile_t]                         # (1,T')
            m = jnp.dot(pwm_ref[...], sk,
                        preferred_element_type=jnp.float32) + pbm_ref[...]
            logs = jnp.dot(pws_ref[...], sk,
                           preferred_element_type=jnp.float32) + pbs_ref[...]
            m = m * cm
            logs = logs * cm
            z = (m + noise_ref[0] * jnp.exp(logs)) * cm
            z_ref[0] = z
            m_ref[0] = m
            logs_ref[0] = logs
            mask_ref[0] = cm

    return kernel


# -----------------------------------------------------------------------------
# Wrapper
# -----------------------------------------------------------------------------
def encoder_forward(params, x_ncl, x_lengths, noise_nct, *,
                    out_channels, kernel_size, dilation_rate, n_layers,
                    tile_t=512):
    B, Cin, T = x_ncl.shape
    H = params["pre_w"].shape[0]
    L = n_layers
    K = kernel_size
    C = out_channels

    dils, pads, HALO, LM, RM = _wn_geometry(K, dilation_rate, L)

    # Lane-dense time: pad T up to a multiple of 128, then tile (TILE is a
    # multiple of 128, default 512).
    T_pad = ((T + 127) // 128) * 128
    TILE = min(tile_t, T_pad)
    T_pad = ((T_pad + TILE - 1) // TILE) * TILE
    n_t = T_pad // TILE
    W = TILE + 2 * HALO

    x = x_ncl.astype(jnp.bfloat16)
    # One-time halo/pad in the wrapper (replaces any per-layer padding): the
    # overlapping haloed windows make each (b, t) grid step independent.
    x_pad = jnp.pad(x, ((0, 0), (0, 0), (HALO, HALO + T_pad - T)))
    x_win = jnp.stack(
        [x_pad[:, :, i * TILE:i * TILE + W] for i in range(n_t)],
        axis=1)                                                # (B, n_t, Cin, W)
    noise = jnp.pad(noise_nct.astype(jnp.float32),
                    ((0, 0), (0, 0), (0, T_pad - T)))          # (B, C, T_pad)
    lengths = x_lengths.astype(jnp.int32)

    # Split proj into (m, logs) halves outside the kernel (avoids an unaligned
    # sublane slice of the stats tensor in-kernel).
    pwm, pws = params["proj_w"][:C], params["proj_w"][C:]
    pbm, pbs = params["proj_b"][:C], params["proj_b"][C:]

    kernel = make_fused_encoder_kernel(
        n_layers=L, kernel_size=K, dilation_rate=dilation_rate, hidden=H,
        tile_t=TILE, halo=HALO, lmarg=LM, rmarg=RM)

    xmap = lambda b, t, l, lens: (b, t, 0, 0)     # haloed x window
    tmap = lambda b, t, l, lens: (b, 0, t)        # per-tile (B, C, T) blocks
    cmap = lambda b, t, l, lens: (0, 0)           # constant 2-D weights
    lmap = lambda b, t, l, lens: (l, 0, 0)        # per-layer weight slices

    grid_spec = pltpu.PrefetchScalarGridSpec(
        num_scalar_prefetch=1,
        grid=(B, n_t, L),
        in_specs=[
            pl.BlockSpec((1, 1, Cin, W), xmap),      # x windows (haloed)
            pl.BlockSpec((1, C, TILE), tmap),        # noise
            pl.BlockSpec((H, Cin), cmap),            # pre_w
            pl.BlockSpec((H, 1), cmap),              # pre_b
            pl.BlockSpec((1, 2 * H, K * H), lmap),   # in_w   (layer l only)
            pl.BlockSpec((1, 2 * H, 1), lmap),       # in_b
            pl.BlockSpec((1, 2 * H, H), lmap),       # rs_w
            pl.BlockSpec((1, 2 * H, 1), lmap),       # rs_b
            pl.BlockSpec((C, H), cmap),              # proj_w (m half)
            pl.BlockSpec((C, 1), cmap),              # proj_b (m half)
            pl.BlockSpec((C, H), cmap),              # proj_w (logs half)
            pl.BlockSpec((C, 1), cmap),              # proj_b (logs half)
        ],
        out_specs=(
            pl.BlockSpec((1, C, TILE), tmap),        # z
            pl.BlockSpec((1, C, TILE), tmap),        # m
            pl.BlockSpec((1, C, TILE), tmap),        # logs
            pl.BlockSpec((1, 1, TILE), tmap),        # x_mask
        ),
        scratch_shapes=[
            pltpu.VMEM((H, LM + W + RM), jnp.bfloat16),  # bf16 h + zero margins
            pltpu.VMEM((H, W), jnp.float32),             # f32 residual h
            pltpu.VMEM((H, W), jnp.float32),             # skip accumulator
            pltpu.VMEM((K * H, W), jnp.bfloat16),        # im2col tap stack
        ],
    )

    z, m, logs, mask = pl.pallas_call(
        kernel,
        out_shape=(
            jax.ShapeDtypeStruct((B, C, T_pad), jnp.float32),
            jax.ShapeDtypeStruct((B, C, T_pad), jnp.float32),
            jax.ShapeDtypeStruct((B, C, T_pad), jnp.float32),
            jax.ShapeDtypeStruct((B, 1, T_pad), jnp.float32),
        ),
        grid_spec=grid_spec,
        compiler_params=pltpu.CompilerParams(
            # batch / time tiles shard across v7x's two TensorCores; the
            # layer axis carries the residual/skip state -> arbitrary.
            dimension_semantics=("parallel", "parallel", "arbitrary"),
            vmem_limit_bytes=48 * 1024 * 1024),      # safe on v5e/v6e/v7x
    )(lengths, x_win, noise,
      params["pre_w"], params["pre_b"],
      params["in_w"], params["in_b"],
      params["rs_w"], params["rs_b"],
      pwm, pbm, pws, pbs)

    # Crop the lane padding back to the caller's T.
    return z[:, :, :T], m[:, :, :T], logs[:, :, :T], mask[:, :, :T]


# -----------------------------------------------------------------------------
# Parameter init (deterministic, synthetic; weights bf16, biases f32)
# -----------------------------------------------------------------------------
def init_params(key, in_channels, out_channels, hidden, kernel_size, n_layers):
    keys = jax.random.split(key, 8)

    def norm(k, shape, fan_in):
        return (jax.random.normal(k, shape, jnp.float32) / np.sqrt(fan_in))

    p = {}
    p["pre_w"] = norm(keys[0], (hidden, in_channels),
                      in_channels).astype(jnp.bfloat16)
    p["pre_b"] = 0.01 * jax.random.normal(keys[1], (hidden, 1), jnp.float32)
    p["in_w"] = norm(keys[2], (n_layers, 2 * hidden, kernel_size * hidden),
                     kernel_size * hidden).astype(jnp.bfloat16)
    p["in_b"] = 0.01 * jax.random.normal(
        keys[3], (n_layers, 2 * hidden, 1), jnp.float32)
    p["rs_w"] = norm(keys[4], (n_layers, 2 * hidden, hidden),
                     hidden).astype(jnp.bfloat16)
    p["rs_b"] = 0.01 * jax.random.normal(
        keys[5], (n_layers, 2 * hidden, 1), jnp.float32)
    p["proj_w"] = norm(keys[6], (2 * out_channels, hidden),
                       hidden).astype(jnp.bfloat16)
    p["proj_b"] = 0.01 * jax.random.normal(
        keys[7], (2 * out_channels, 1), jnp.float32)
    return p


# -----------------------------------------------------------------------------
# Pure-JAX reference (same bf16 quantization points, f32 accumulation)
# -----------------------------------------------------------------------------
def encoder_ref(params, x_ncl, x_lengths, noise_nct, *,
                out_channels, kernel_size, dilation_rate, n_layers):
    B, Cin, T = x_ncl.shape
    H = params["pre_w"].shape[0]
    K = kernel_size
    x = x_ncl.astype(jnp.bfloat16)
    mask = (jnp.arange(T)[None, None, :] <
            x_lengths[:, None, None]).astype(jnp.float32)              # (B,1,T)
    h = jnp.einsum("hc,bct->bht", params["pre_w"], x,
                   preferred_element_type=jnp.float32)
    h = (h + params["pre_b"][None]) * mask
    skip = jnp.zeros_like(h)
    for i in range(n_layers):
        d = dilation_rate ** i
        pad = ((K - 1) * d) // 2
        hpad = jnp.pad(h, ((0, 0), (0, 0), (pad, pad)))
        x_stack = jnp.concatenate(
            [hpad[:, :, j * d:j * d + T] for j in range(K)],
            axis=1).astype(jnp.bfloat16)                               # (B,K*H,T)
        acc = jnp.einsum("ok,bkt->bot", params["in_w"][i], x_stack,
                         preferred_element_type=jnp.float32)
        acc = acc + params["in_b"][i][None]
        acts = jnp.tanh(acc[:, :H]) * jax.nn.sigmoid(acc[:, H:])
        rs = jnp.einsum("oh,bht->bot", params["rs_w"][i],
                        acts.astype(jnp.bfloat16),
                        preferred_element_type=jnp.float32)
        rs = rs + params["rs_b"][i][None]
        if i < n_layers - 1:
            h = (h + rs[:, :H]) * mask
            skip = skip + rs[:, H:]
        else:
            skip = (skip + rs[:, :H]) * mask
    stats = jnp.einsum("oh,bht->bot", params["proj_w"],
                       skip.astype(jnp.bfloat16),
                       preferred_element_type=jnp.float32)
    stats = (stats + params["proj_b"][None]) * mask
    m = stats[:, :out_channels]
    logs = stats[:, out_channels:]
    z = (m + noise_nct * jnp.exp(logs)) * mask
    return z, m, logs, mask


# -----------------------------------------------------------------------------
# Main
# -----------------------------------------------------------------------------
if __name__ == "__main__":
    in_channels = 4
    out_channels = 4
    hidden_channels = 32
    kernel_size = 5
    dilation_rate = 2
    n_layers = 3
    B, T = 2, 16

    key = jax.random.PRNGKey(0)
    k_param, k_x, k_noise = jax.random.split(key, 3)

    params = init_params(k_param, in_channels, out_channels,
                         hidden_channels, kernel_size, n_layers)

    x = jax.random.normal(k_x, (B, in_channels, T), jnp.float32)   # NCL (torch)
    x_lengths = jnp.array([16, 11], dtype=jnp.int32)
    noise = jax.random.normal(k_noise, (B, out_channels, T), jnp.float32)

    fwd = jax.jit(functools.partial(
        encoder_forward,
        out_channels=out_channels, kernel_size=kernel_size,
        dilation_rate=dilation_rate, n_layers=n_layers))

    z, m, logs, x_mask = fwd(params, x, x_lengths, noise)
    jax.block_until_ready((z, m, logs, x_mask))

    z_r, m_r, logs_r, mask_r = encoder_ref(
        params, x, x_lengths, noise,
        out_channels=out_channels, kernel_size=kernel_size,
        dilation_rate=dilation_rate, n_layers=n_layers)

    np.testing.assert_allclose(np.asarray(z), np.asarray(z_r),
                               rtol=1e-2, atol=1e-2)
    np.testing.assert_allclose(np.asarray(m), np.asarray(m_r),
                               rtol=1e-2, atol=1e-2)
    np.testing.assert_allclose(np.asarray(logs), np.asarray(logs_r),
                               rtol=1e-2, atol=1e-2)
    np.testing.assert_allclose(np.asarray(x_mask), np.asarray(mask_r),
                               rtol=0, atol=0)

    assert z.shape == (B, out_channels, T)
    assert m.shape == (B, out_channels, T)
    assert logs.shape == (B, out_channels, T)
    assert x_mask.shape == (B, 1, T)

    print("KERNEL_OK")
</pallas_src>

<mosaic_0001>
module attributes {stable_mosaic.version = 11 : i64} {
  func.func @kernel(%arg0: i32, %arg1: i32, %arg2: i32, %arg3: memref<2xi32, #tpu.memory_space<smem>>, %arg4: memref<1x1x4x156xbf16, #tpu.memory_space<vmem>>, %arg5: memref<1x4x128xf32, #tpu.memory_space<vmem>>, %arg6: memref<32x4xbf16, #tpu.memory_space<vmem>>, %arg7: memref<32x1xf32, #tpu.memory_space<vmem>>, %arg8: memref<1x64x160xbf16, #tpu.memory_space<vmem>>, %arg9: memref<1x64x1xf32, #tpu.memory_space<vmem>>, %arg10: memref<1x64x32xbf16, #tpu.memory_space<vmem>>, %arg11: memref<1x64x1xf32, #tpu.memory_space<vmem>>, %arg12: memref<4x32xbf16, #tpu.memory_space<vmem>>, %arg13: memref<4x1xf32, #tpu.memory_space<vmem>>, %arg14: memref<4x32xbf16, #tpu.memory_space<vmem>>, %arg15: memref<4x1xf32, #tpu.memory_space<vmem>>, %arg16: memref<1x4x128xf32, #tpu.memory_space<vmem>>, %arg17: memref<1x4x128xf32, #tpu.memory_space<vmem>>, %arg18: memref<1x4x128xf32, #tpu.memory_space<vmem>>, %arg19: memref<1x1x128xf32, #tpu.memory_space<vmem>>, %arg20: memref<32x172xbf16, #tpu.memory_space<vmem>>, %arg21: memref<32x156xf32, #tpu.memory_space<vmem>>, %arg22: memref<32x156xf32, #tpu.memory_space<vmem>>, %arg23: memref<160x156xbf16, #tpu.memory_space<vmem>>) attributes {dimension_semantics = [#tpu.dimension_semantics<parallel>, #tpu.dimension_semantics<parallel>, #tpu.dimension_semantics<arbitrary>], iteration_bounds = array<i64: 2, 1, 3>, scalar_prefetch = 1 : i64, scratch_operands = 4 : i64, tpu.core_type = #tpu.core_type<tc>, window_params = [{transform_indices = @transform_0, window_bounds = array<i64: 1, 1, 4, 156>}, {transform_indices = @transform_1, window_bounds = array<i64: 1, 4, 128>}, {pipeline_mode = #tpu.pipeline_mode<synchronous>, transform_indices = @transform_2, window_bounds = array<i64: 32, 4>}, {pipeline_mode = #tpu.pipeline_mode<synchronous>, transform_indices = @transform_3, window_bounds = array<i64: 32, 1>}, {transform_indices = @transform_4, window_bounds = array<i64: 1, 64, 160>}, {transform_indices = @transform_5, window_bounds = array<i64: 1, 64, 1>}, {transform_indices = @transform_6, window_bounds = array<i64: 1, 64, 32>}, {transform_indices = @transform_7, window_bounds = array<i64: 1, 64, 1>}, {pipeline_mode = #tpu.pipeline_mode<synchronous>, transform_indices = @transform_8, window_bounds = array<i64: 4, 32>}, {pipeline_mode = #tpu.pipeline_mode<synchronous>, transform_indices = @transform_9, window_bounds = array<i64: 4, 1>}, {pipeline_mode = #tpu.pipeline_mode<synchronous>, transform_indices = @transform_10, window_bounds = array<i64: 4, 32>}, {pipeline_mode = #tpu.pipeline_mode<synchronous>, transform_indices = @transform_11, window_bounds = array<i64: 4, 1>}, {transform_indices = @transform_12, window_bounds = array<i64: 1, 4, 128>}, {transform_indices = @transform_13, window_bounds = array<i64: 1, 4, 128>}, {transform_indices = @transform_14, window_bounds = array<i64: 1, 4, 128>}, {transform_indices = @transform_15, window_bounds = array<i64: 1, 1, 128>}]} {
    %0 = arith.index_cast %arg0 : i32 to index
    %1 = memref.load %arg3[%0] : memref<2xi32, #tpu.memory_space<smem>>
    %c128_i32 = arith.constant 128 : i32
    %2 = arith.muli %arg1, %c128_i32 : i32
    %c14_i32 = arith.constant 14 : i32
    %3 = arith.subi %2, %c14_i32 : i32
    %4 = tpu.iota {dimensions = array<i32: 1>} : vector<1x156xi32>
    %5 = vector.broadcast %3 : i32 to vector<1x156xi32>
    %6 = arith.addi %5, %4 : vector<1x156xi32>
    %c0_i32 = arith.constant 0 : i32
    %7 = vector.broadcast %c0_i32 : i32 to vector<1x156xi32>
    %8 = arith.cmpi sge, %6, %7 : vector<1x156xi32>
    %9 = vector.broadcast %1 : i32 to vector<1x156xi32>
    %10 = arith.cmpi slt, %6, %9 : vector<1x156xi32>
    %11 = arith.andi %8, %10 : vector<1x156xi1>
    %cst = arith.constant 1.000000e+00 : f32
    %cst_0 = arith.constant 0.000000e+00 : f32
    %12 = vector.broadcast %cst : f32 to vector<1x156xf32>
    %13 = vector.broadcast %cst_0 : f32 to vector<1x156xf32>
    %14 = arith.select %11, %12, %13 : vector<1x156xi1>, vector<1x156xf32>
    %15 = vector.shape_cast %14 : vector<1x156xf32> to vector<1x156xf32>
    %16 = vector.broadcast %15 : vector<1x156xf32> to vector<32x156xf32>
    %c0_i32_1 = arith.constant 0 : i32
    %17 = arith.cmpi eq, %arg2, %c0_i32_1 : i32
    %18 = arith.extui %17 : i1 to i32
    %c0_i32_2 = arith.constant 0 : i32
    %19 = arith.cmpi ne, %18, %c0_i32_2 : i32
    scf.if %19 {
      %cst_29 = arith.constant 0.000000e+00 : bf16
      %61 = vector.broadcast %cst_29 : bf16 to vector<32x172xbf16>
      %c0_30 = arith.constant 0 : index
      %c0_31 = arith.constant 0 : index
      %62 = vector.load %arg20[%c0_30, %c0_31] : memref<32x172xbf16, #tpu.memory_space<vmem>>, vector<32x172xbf16>
      tpu.vector_store %arg20[%c0_30, %c0_31], %61 {strides = array<i32>} : memref<32x172xbf16, #tpu.memory_space<vmem>>, vector<32x172xbf16>,
      %cst_32 = arith.constant 0.000000e+00 : f32
      %63 = vector.broadcast %cst_32 : f32 to vector<32x156xf32>
      %c0_33 = arith.constant 0 : index
      %c0_34 = arith.constant 0 : index
      %64 = vector.load %arg22[%c0_33, %c0_34] : memref<32x156xf32, #tpu.memory_space<vmem>>, vector<32x156xf32>
      tpu.vector_store %arg22[%c0_33, %c0_34], %63 {strides = array<i32>} : memref<32x156xf32, #tpu.memory_space<vmem>>, vector<32x156xf32>,
      %c0_35 = arith.constant 0 : index
      %c0_36 = arith.constant 0 : index
      %65 = vector.load %arg6[%c0_35, %c0_36] : memref<32x4xbf16, #tpu.memory_space<vmem>>, vector<32x4xbf16>
      %c0_37 = arith.constant 0 : index
      %c0_38 = arith.constant 0 : index
      %c0_39 = arith.constant 0 : index
      %c0_40 = arith.constant 0 : index
      %66 = vector.load %arg4[%c0_37, %c0_38, %c0_39, %c0_40] : memref<1x1x4x156xbf16, #tpu.memory_space<vmem>>, vector<1x1x4x156xbf16>
      %67 = vector.shape_cast %66 : vector<1x1x4x156xbf16> to vector<4x156xbf16>
      %cst_41 = arith.constant dense<0.000000e+00> : vector<32x156xf32>
      %68 = tpu.matmul %65, %67, %cst_41 {dimension_numbers = #tpu.dot_dimension_numbers<[1], [0], [0], [1], [0, 0, 1, 1], [], []>} : vector<32x4xbf16>, vector<4x156xbf16>, vector<32x156xf32> -> vector<32x156xf32>
      %c0_42 = arith.constant 0 : index
      %c0_43 = arith.constant 0 : index
      %69 = vector.load %arg7[%c0_42, %c0_43] : memref<32x1xf32, #tpu.memory_space<vmem>>, vector<32x1xf32>
      %70 = vector.broadcast %69 : vector<32x1xf32> to vector<32x156xf32>
      %71 = arith.addf %68, %70 : vector<32x156xf32>
      %72 = arith.mulf %71, %16 : vector<32x156xf32>
      %c0_44 = arith.constant 0 : index
      %c0_45 = arith.constant 0 : index
      %73 = vector.load %arg21[%c0_44, %c0_45] : memref<32x156xf32, #tpu.memory_space<vmem>>, vector<32x156xf32>
      tpu.vector_store %arg21[%c0_44, %c0_45], %72 {strides = array<i32>} : memref<32x156xf32, #tpu.memory_space<vmem>>, vector<32x156xf32>,
      %74 = arith.truncf %72 : vector<32x156xf32> to vector<32x156xbf16>
      %c0_46 = arith.constant 0 : index
      %c8 = arith.constant 8 : index
      %75 = vector.load %arg20[%c0_46, %c8] : memref<32x172xbf16, #tpu.memory_space<vmem>>, vector<32x156xbf16>
      tpu.vector_store %arg20[%c0_46, %c8], %74 {strides = array<i32>} : memref<32x172xbf16, #tpu.memory_space<vmem>>, vector<32x156xbf16>,
    } else {
    }
    %c0 = arith.constant 0 : index
    %c0_3 = arith.constant 0 : index
    %20 = vector.load %arg20[%c0, %c0_3] : memref<32x172xbf16, #tpu.memory_space<vmem>>, vector<32x172xbf16>
    %c0_i32_4 = arith.constant 0 : i32
    %21 = arith.cmpi eq, %arg2, %c0_i32_4 : i32
    %22 = arith.extui %21 : i1 to i32
    %c0_i32_5 = arith.constant 0 : i32
    %23 = arith.cmpi ne, %22, %c0_i32_5 : i32
    scf.if %23 {
      %61 = vector.extract_strided_slice %20 {offsets = [0, 6], sizes = [32, 156], strides = [1, 1]} : vector<32x172xbf16> to vector<32x156xbf16>
      %62 = vector.extract_strided_slice %20 {offsets = [0, 7], sizes = [32, 156], strides = [1, 1]} : vector<32x172xbf16> to vector<32x156xbf16>
      %63 = vector.extract_strided_slice %20 {offsets = [0, 8], sizes = [32, 156], strides = [1, 1]} : vector<32x172xbf16> to vector<32x156xbf16>
      %64 = vector.extract_strided_slice %20 {offsets = [0, 9], sizes = [32, 156], strides = [1, 1]} : vector<32x172xbf16> to vector<32x156xbf16>
      %65 = vector.extract_strided_slice %20 {offsets = [0, 10], sizes = [32, 156], strides = [1, 1]} : vector<32x172xbf16> to vector<32x156xbf16>
      %66 = tpu.concatenate %61, %62, %63, %64, %65 in 0 : vector<32x156xbf16>, vector<32x156xbf16>, vector<32x156xbf16>, vector<32x156xbf16>, vector<32x156xbf16> -> vector<160x156xbf16>
      %c0_29 = arith.constant 0 : index
      %c0_30 = arith.constant 0 : index
      %67 = vector.load %arg23[%c0_29, %c0_30] : memref<160x156xbf16, #tpu.memory_space<vmem>>, vector<160x156xbf16>
      tpu.vector_store %arg23[%c0_29, %c0_30], %66 {strides = array<i32>} : memref<160x156xbf16, #tpu.memory_space<vmem>>, vector<160x156xbf16>,
    } else {
    }
    %c1_i32 = arith.constant 1 : i32
    %24 = arith.cmpi eq, %arg2, %c1_i32 : i32
    %25 = arith.extui %24 : i1 to i32
    %c0_i32_6 = arith.constant 0 : i32
    %26 = arith.cmpi ne, %25, %c0_i32_6 : i32
    scf.if %26 {
      %61 = vector.extract_strided_slice %20 {offsets = [0, 4], sizes = [32, 156], strides = [1, 1]} : vector<32x172xbf16> to vector<32x156xbf16>
      %62 = vector.extract_strided_slice %20 {offsets = [0, 6], sizes = [32, 156], strides = [1, 1]} : vector<32x172xbf16> to vector<32x156xbf16>
      %63 = vector.extract_strided_slice %20 {offsets = [0, 8], sizes = [32, 156], strides = [1, 1]} : vector<32x172xbf16> to vector<32x156xbf16>
      %64 = vector.extract_strided_slice %20 {offsets = [0, 10], sizes = [32, 156], strides = [1, 1]} : vector<32x172xbf16> to vector<32x156xbf16>
      %65 = vector.extract_strided_slice %20 {offsets = [0, 12], sizes = [32, 156], strides = [1, 1]} : vector<32x172xbf16> to vector<32x156xbf16>
      %66 = tpu.concatenate %61, %62, %63, %64, %65 in 0 : vector<32x156xbf16>, vector<32x156xbf16>, vector<32x156xbf16>, vector<32x156xbf16>, vector<32x156xbf16> -> vector<160x156xbf16>
      %c0_29 = arith.constant 0 : index
      %c0_30 = arith.constant 0 : index
      %67 = vector.load %arg23[%c0_29, %c0_30] : memref<160x156xbf16, #tpu.memory_space<vmem>>, vector<160x156xbf16>
      tpu.vector_store %arg23[%c0_29, %c0_30], %66 {strides = array<i32>} : memref<160x156xbf16, #tpu.memory_space<vmem>>, vector<160x156xbf16>,
    } else {
    }
    %c2_i32 = arith.constant 2 : i32
    %27 = arith.cmpi eq, %arg2, %c2_i32 : i32
    %28 = arith.extui %27 : i1 to i32
    %c0_i32_7 = arith.constant 0 : i32
    %29 = arith.cmpi ne, %28, %c0_i32_7 : i32
    scf.if %29 {
      %61 = vector.extract_strided_slice %20 {offsets = [0, 0], sizes = [32, 156], strides = [1, 1]} : vector<32x172xbf16> to vector<32x156xbf16>
      %62 = vector.extract_strided_slice %20 {offsets = [0, 4], sizes = [32, 156], strides = [1, 1]} : vector<32x172xbf16> to vector<32x156xbf16>
      %63 = vector.extract_strided_slice %20 {offsets = [0, 8], sizes = [32, 156], strides = [1, 1]} : vector<32x172xbf16> to vector<32x156xbf16>
      %64 = vector.extract_strided_slice %20 {offsets = [0, 12], sizes = [32, 156], strides = [1, 1]} : vector<32x172xbf16> to vector<32x156xbf16>
      %65 = vector.extract_strided_slice %20 {offsets = [0, 16], sizes = [32, 156], strides = [1, 1]} : vector<32x172xbf16> to vector<32x156xbf16>
      %66 = tpu.concatenate %61, %62, %63, %64, %65 in 0 : vector<32x156xbf16>, vector<32x156xbf16>, vector<32x156xbf16>, vector<32x156xbf16>, vector<32x156xbf16> -> vector<160x156xbf16>
      %c0_29 = arith.constant 0 : index
      %c0_30 = arith.constant 0 : index
      %67 = vector.load %arg23[%c0_29, %c0_30] : memref<160x156xbf16, #tpu.memory_space<vmem>>, vector<160x156xbf16>
      tpu.vector_store %arg23[%c0_29, %c0_30], %66 {strides = array<i32>} : memref<160x156xbf16, #tpu.memory_space<vmem>>, vector<160x156xbf16>,
    } else {
    }
    %c0_8 = arith.constant 0 : index
    %c0_9 = arith.constant 0 : index
    %c0_10 = arith.constant 0 : index
    %30 = vector.load %arg8[%c0_8, %c0_9, %c0_10] : memref<1x64x160xbf16, #tpu.memory_space<vmem>>, vector<1x64x160xbf16>
    %31 = vector.shape_cast %30 : vector<1x64x160xbf16> to vector<64x160xbf16>
    %c0_11 = arith.constant 0 : index
    %c0_12 = arith.constant 0 : index
    %32 = vector.load %arg23[%c0_11, %c0_12] : memref<160x156xbf16, #tpu.memory_space<vmem>>, vector<160x156xbf16>
    %cst_13 = arith.constant dense<0.000000e+00> : vector<64x156xf32>
    %33 = tpu.matmul %31, %32, %cst_13 {dimension_numbers = #tpu.dot_dimension_numbers<[1], [0], [0], [1], [0, 0, 1, 1], [], []>} : vector<64x160xbf16>, vector<160x156xbf16>, vector<64x156xf32> -> vector<64x156xf32>
    %c0_14 = arith.constant 0 : index
    %c0_15 = arith.constant 0 : index
    %c0_16 = arith.constant 0 : index
    %34 = vector.load %arg9[%c0_14, %c0_15, %c0_16] : memref<1x64x1xf32, #tpu.memory_space<vmem>>, vector<1x64x1xf32>
    %35 = vector.shape_cast %34 : vector<1x64x1xf32> to vector<64x1xf32>
    %36 = vector.broadcast %35 : vector<64x1xf32> to vector<64x156xf32>
    %37 = arith.addf %33, %36 : vector<64x156xf32>
    %38 = vector.extract_strided_slice %37 {offsets = [0, 0], sizes = [32, 156], strides = [1, 1]} : vector<64x156xf32> to vector<32x156xf32>
    %39 = math.tanh %38 : vector<32x156xf32>
    %40 = vector.extract_strided_slice %37 {offsets = [32, 0], sizes = [32, 156], strides = [1, 1]} : vector<64x156xf32> to vector<32x156xf32>
    %41 = arith.negf %40 : vector<32x156xf32>
    %42 = math.exp %41 : vector<32x156xf32>
    %cst_17 = arith.constant 1.000000e+00 : f32
    %43 = vector.broadcast %cst_17 : f32 to vector<32x156xf32>
    %44 = arith.addf %43, %42 : vector<32x156xf32>
    %45 = arith.divf %43, %44 : vector<32x156xf32>
    %46 = arith.mulf %39, %45 : vector<32x156xf32>
    %c0_18 = arith.constant 0 : index
    %c0_19 = arith.constant 0 : index
    %c0_20 = arith.constant 0 : index
    %47 = vector.load %arg10[%c0_18, %c0_19, %c0_20] : memref<1x64x32xbf16, #tpu.memory_space<vmem>>, vector<1x64x32xbf16>
    %48 = vector.shape_cast %47 : vector<1x64x32xbf16> to vector<64x32xbf16>
    %49 = arith.truncf %46 : vector<32x156xf32> to vector<32x156xbf16>
    %cst_21 = arith.constant dense<0.000000e+00> : vector<64x156xf32>
    %50 = tpu.matmul %48, %49, %cst_21 {dimension_numbers = #tpu.dot_dimension_numbers<[1], [0], [0], [1], [0, 0, 1, 1], [], []>} : vector<64x32xbf16>, vector<32x156xbf16>, vector<64x156xf32> -> vector<64x156xf32>
    %c0_22 = arith.constant 0 : index
    %c0_23 = arith.constant 0 : index
    %c0_24 = arith.constant 0 : index
    %51 = vector.load %arg11[%c0_22, %c0_23, %c0_24] : memref<1x64x1xf32, #tpu.memory_space<vmem>>, vector<1x64x1xf32>
    %52 = vector.shape_cast %51 : vector<1x64x1xf32> to vector<64x1xf32>
    %53 = vector.broadcast %52 : vector<64x1xf32> to vector<64x156xf32>
    %54 = arith.addf %50, %53 : vector<64x156xf32>
    %c2_i32_25 = arith.constant 2 : i32
    %55 = arith.cmpi slt, %arg2, %c2_i32_25 : i32
    %56 = arith.extui %55 : i1 to i32
    %c0_i32_26 = arith.constant 0 : i32
    %57 = arith.cmpi ne, %56, %c0_i32_26 : i32
    scf.if %57 {
      %c0_29 = arith.constant 0 : index
      %c0_30 = arith.constant 0 : index
      %61 = vector.load %arg21[%c0_29, %c0_30] : memref<32x156xf32, #tpu.memory_space<vmem>>, vector<32x156xf32>
      %62 = vector.extract_strided_slice %54 {offsets = [0, 0], sizes = [32, 156], strides = [1, 1]} : vector<64x156xf32> to vector<32x156xf32>
      %63 = arith.addf %61, %62 : vector<32x156xf32>
      %64 = arith.mulf %63, %16 : vector<32x156xf32>
      %c0_31 = arith.constant 0 : index
      %c0_32 = arith.constant 0 : index
      %65 = vector.load %arg21[%c0_31, %c0_32] : memref<32x156xf32, #tpu.memory_space<vmem>>, vector<32x156xf32>
      tpu.vector_store %arg21[%c0_31, %c0_32], %64 {strides = array<i32>} : memref<32x156xf32, #tpu.memory_space<vmem>>, vector<32x156xf32>,
      %66 = arith.truncf %64 : vector<32x156xf32> to vector<32x156xbf16>
      %c0_33 = arith.constant 0 : index
      %c8 = arith.constant 8 : index
      %67 = vector.load %arg20[%c0_33, %c8] : memref<32x172xbf16, #tpu.memory_space<vmem>>, vector<32x156xbf16>
      tpu.vector_store %arg20[%c0_33, %c8], %66 {strides = array<i32>} : memref<32x172xbf16, #tpu.memory_space<vmem>>, vector<32x156xbf16>,
      %c0_34 = arith.constant 0 : index
      %c0_35 = arith.constant 0 : index
      %68 = vector.load %arg22[%c0_34, %c0_35] : memref<32x156xf32, #tpu.memory_space<vmem>>, vector<32x156xf32>
      %69 = vector.extract_strided_slice %54 {offsets = [32, 0], sizes = [32, 156], strides = [1, 1]} : vector<64x156xf32> to vector<32x156xf32>
      %70 = arith.addf %68, %69 : vector<32x156xf32>
      %c0_36 = arith.constant 0 : index
      %c0_37 = arith.constant 0 : index
      %71 = vector.load %arg22[%c0_36, %c0_37] : memref<32x156xf32, #tpu.memory_space<vmem>>, vector<32x156xf32>
      tpu.vector_store %arg22[%c0_36, %c0_37], %70 {strides = array<i32>} : memref<32x156xf32, #tpu.memory_space<vmem>>, vector<32x156xf32>,
    } else {
    }
    %c2_i32_27 = arith.constant 2 : i32
    %58 = arith.cmpi eq, %arg2, %c2_i32_27 : i32
    %59 = arith.extui %58 : i1 to i32
    %c0_i32_28 = arith.constant 0 : i32
    %60 = arith.cmpi ne, %59, %c0_i32_28 : i32
    scf.if %60 {
      %c0_29 = arith.constant 0 : index
      %c0_30 = arith.constant 0 : index
      %61 = vector.load %arg22[%c0_29, %c0_30] : memref<32x156xf32, #tpu.memory_space<vmem>>, vector<32x156xf32>
      %62 = vector.extract_strided_slice %54 {offsets = [0, 0], sizes = [32, 156], strides = [1, 1]} : vector<64x156xf32> to vector<32x156xf32>
      %63 = arith.addf %61, %62 : vector<32x156xf32>
      %64 = arith.mulf %63, %16 : vector<32x156xf32>
      %65 = vector.extract_strided_slice %64 {offsets = [0, 14], sizes = [32, 128], strides = [1, 1]} : vector<32x156xf32> to vector<32x128xf32>
      %66 = arith.truncf %65 : vector<32x128xf32> to vector<32x128xbf16>
      %67 = vector.extract_strided_slice %14 {offsets = [0, 14], sizes = [1, 128], strides = [1, 1]} : vector<1x156xf32> to vector<1x128xf32>
      %c0_31 = arith.constant 0 : index
      %c0_32 = arith.constant 0 : index
      %68 = vector.load %arg12[%c0_31, %c0_32] : memref<4x32xbf16, #tpu.memory_space<vmem>>, vector<4x32xbf16>
      %cst_33 = arith.constant dense<0.000000e+00> : vector<4x128xf32>
      %69 = tpu.matmul %68, %66, %cst_33 {dimension_numbers = #tpu.dot_dimension_numbers<[1], [0], [0], [1], [0, 0, 1, 1], [], []>} : vector<4x32xbf16>, vector<32x128xbf16>, vector<4x128xf32> -> vector<4x128xf32>
      %c0_34 = arith.constant 0 : index
      %c0_35 = arith.constant 0 : index
      %70 = vector.load %arg13[%c0_34, %c0_35] : memref<4x1xf32, #tpu.memory_space<vmem>>, vector<4x1xf32>
      %71 = vector.broadcast %70 : vector<4x1xf32> to vector<4x128xf32>
      %72 = arith.addf %69, %71 : vector<4x128xf32>
      %c0_36 = arith.constant 0 : index
      %c0_37 = arith.constant 0 : index
      %73 = vector.load %arg14[%c0_36, %c0_37] : memref<4x32xbf16, #tpu.memory_space<vmem>>, vector<4x32xbf16>
      %cst_38 = arith.constant dense<0.000000e+00> : vector<4x128xf32>
      %74 = tpu.matmul %73, %66, %cst_38 {dimension_numbers = #tpu.dot_dimension_numbers<[1], [0], [0], [1], [0, 0, 1, 1], [], []>} : vector<4x32xbf16>, vector<32x128xbf16>, vector<4x128xf32> -> vector<4x128xf32>
      %c0_39 = arith.constant 0 : index
      %c0_40 = arith.constant 0 : index
      %75 = vector.load %arg15[%c0_39, %c0_40] : memref<4x1xf32, #tpu.memory_space<vmem>>, vector<4x1xf32>
      %76 = vector.broadcast %75 : vector<4x1xf32> to vector<4x128xf32>
      %77 = arith.addf %74, %76 : vector<4x128xf32>
      %78 = vector.broadcast %67 : vector<1x128xf32> to vector<4x128xf32>
      %79 = arith.mulf %72, %78 : vector<4x128xf32>
      %80 = vector.broadcast %67 : vector<1x128xf32> to vector<4x128xf32>
      %81 = arith.mulf %77, %80 : vector<4x128xf32>
      %c0_41 = arith.constant 0 : index
      %c0_42 = arith.constant 0 : index
      %c0_43 = arith.constant 0 : index
      %82 = vector.load %arg5[%c0_41, %c0_42, %c0_43] : memref<1x4x128xf32, #tpu.memory_space<vmem>>, vector<1x4x128xf32>
      %83 = vector.shape_cast %82 : vector<1x4x128xf32> to vector<4x128xf32>
      %84 = math.exp %81 : vector<4x128xf32>
      %85 = arith.mulf %83, %84 : vector<4x128xf32>
      %86 = arith.addf %79, %85 : vector<4x128xf32>
      %87 = vector.broadcast %67 : vector<1x128xf32> to vector<4x128xf32>
      %88 = arith.mulf %86, %87 : vector<4x128xf32>
      %c0_44 = arith.constant 0 : index
      %c0_45 = arith.constant 0 : index
      %c0_46 = arith.constant 0 : index
      %89 = vector.load %arg16[%c0_44, %c0_45, %c0_46] : memref<1x4x128xf32, #tpu.memory_space<vmem>>, vector<1x4x128xf32>
      %90 = vector.shape_cast %89 : vector<1x4x128xf32> to vector<4x128xf32>
      %91 = vector.shape_cast %88 : vector<4x128xf32> to vector<1x4x128xf32>
      tpu.vector_store %arg16[%c0_44, %c0_45, %c0_46], %91 {strides = array<i32>} : memref<1x4x128xf32, #tpu.memory_space<vmem>>, vector<1x4x128xf32>,
      %c0_47 = arith.constant 0 : index
      %c0_48 = arith.constant 0 : index
      %c0_49 = arith.constant 0 : index
      %92 = vector.load %arg17[%c0_47, %c0_48, %c0_49] : memref<1x4x128xf32, #tpu.memory_space<vmem>>, vector<1x4x128xf32>
      %93 = vector.shape_cast %92 : vector<1x4x128xf32> to vector<4x128xf32>
      %94 = vector.shape_cast %79 : vector<4x128xf32> to vector<1x4x128xf32>
      tpu.vector_store %arg17[%c0_47, %c0_48, %c0_49], %94 {strides = array<i32>} : memref<1x4x128xf32, #tpu.memory_space<vmem>>, vector<1x4x128xf32>,
      %c0_50 = arith.constant 0 : index
      %c0_51 = arith.constant 0 : index
      %c0_52 = arith.constant 0 : index
      %95 = vector.load %arg18[%c0_50, %c0_51, %c0_52] : memref<1x4x128xf32, #tpu.memory_space<vmem>>, vector<1x4x128xf32>
      %96 = vector.shape_cast %95 : vector<1x4x128xf32> to vector<4x128xf32>
      %97 = vector.shape_cast %81 : vector<4x128xf32> to vector<1x4x128xf32>
      tpu.vector_store %arg18[%c0_50, %c0_51, %c0_52], %97 {strides = array<i32>} : memref<1x4x128xf32, #tpu.memory_space<vmem>>, vector<1x4x128xf32>,
      %c0_53 = arith.constant 0 : index
      %c0_54 = arith.constant 0 : index
      %c0_55 = arith.constant 0 : index
      %98 = vector.load %arg19[%c0_53, %c0_54, %c0_55] : memref<1x1x128xf32, #tpu.memory_space<vmem>>, vector<1x1x128xf32>
      %99 = vector.shape_cast %98 : vector<1x1x128xf32> to vector<1x128xf32>
      %100 = vector.shape_cast %67 : vector<1x128xf32> to vector<1x1x128xf32>
      tpu.vector_store %arg19[%c0_53, %c0_54, %c0_55], %100 {strides = array<i32>} : memref<1x1x128xf32, #tpu.memory_space<vmem>>, vector<1x1x128xf32>,
    } else {
    }
    return
  }
  func.func @transform_0(%arg0: i32, %arg1: i32, %arg2: i32, %arg3: memref<2xi32, #tpu.memory_space<smem>>) -> (i32, i32, i32, i32) {
    %c0_i32 = arith.constant 0 : i32
    %c0_i32_0 = arith.constant 0 : i32
    %c0_i32_1 = arith.constant 0 : i32
    return %arg0, %arg1, %c0_i32, %c0_i32_0 : i32, i32, i32, i32
  }
  func.func @transform_1(%arg0: i32, %arg1: i32, %arg2: i32, %arg3: memref<2xi32, #tpu.memory_space<smem>>) -> (i32, i32, i32) {
    %c0_i32 = arith.constant 0 : i32
    %c0_i32_0 = arith.constant 0 : i32
    return %arg0, %c0_i32, %arg1 : i32, i32, i32
  }
  func.func @transform_2(%arg0: i32, %arg1: i32, %arg2: i32, %arg3: memref<2xi32, #tpu.memory_space<smem>>) -> (i32, i32) {
    %c0_i32 = arith.constant 0 : i32
    %c0_i32_0 = arith.constant 0 : i32
    %c0_i32_1 = arith.constant 0 : i32
    return %c0_i32, %c0_i32_0 : i32, i32
  }
  func.func @transform_3(%arg0: i32, %arg1: i32, %arg2: i32, %arg3: memref<2xi32, #tpu.memory_space<smem>>) -> (i32, i32) {
    %c0_i32 = arith.constant 0 : i32
    %c0_i32_0 = arith.constant 0 : i32
    %c0_i32_1 = arith.constant 0 : i32
    return %c0_i32, %c0_i32_0 : i32, i32
  }
  func.func @transform_4(%arg0: i32, %arg1: i32, %arg2: i32, %arg3: memref<2xi32, #tpu.memory_space<smem>>) -> (i32, i32, i32) {
    %c0_i32 = arith.constant 0 : i32
    %c0_i32_0 = arith.constant 0 : i32
    %c0_i32_1 = arith.constant 0 : i32
    return %arg2, %c0_i32, %c0_i32_0 : i32, i32, i32
  }
  func.func @transform_5(%arg0: i32, %arg1: i32, %arg2: i32, %arg3: memref<2xi32, #tpu.memory_space<smem>>) -> (i32, i32, i32) {
    %c0_i32 = arith.constant 0 : i32
    %c0_i32_0 = arith.constant 0 : i32
    %c0_i32_1 = arith.constant 0 : i32
    return %arg2, %c0_i32, %c0_i32_0 : i32, i32, i32
  }
  func.func @transform_6(%arg0: i32, %arg1: i32, %arg2: i32, %arg3: memref<2xi32, #tpu.memory_space<smem>>) -> (i32, i32, i32) {
    %c0_i32 = arith.constant 0 : i32
    %c0_i32_0 = arith.constant 0 : i32
    %c0_i32_1 = arith.constant 0 : i32
    return %arg2, %c0_i32, %c0_i32_0 : i32, i32, i32
  }
  func.func @transform_7(%arg0: i32, %arg1: i32, %arg2: i32, %arg3: memref<2xi32, #tpu.memory_space<smem>>) -> (i32, i32, i32) {
    %c0_i32 = arith.constant 0 : i32
    %c0_i32_0 = arith.constant 0 : i32
    %c0_i32_1 = arith.constant 0 : i32
    return %arg2, %c0_i32, %c0_i32_0 : i32, i32, i32
  }
  func.func @transform_8(%arg0: i32, %arg1: i32, %arg2: i32, %arg3: memref<2xi32, #tpu.memory_space<smem>>) -> (i32, i32) {
    %c0_i32 = arith.constant 0 : i32
    %c0_i32_0 = arith.constant 0 : i32
    %c0_i32_1 = arith.constant 0 : i32
    return %c0_i32, %c0_i32_0 : i32, i32
  }
  func.func @transform_9(%arg0: i32, %arg1: i32, %arg2: i32, %arg3: memref<2xi32, #tpu.memory_space<smem>>) -> (i32, i32) {
    %c0_i32 = arith.constant 0 : i32
    %c0_i32_0 = arith.constant 0 : i32
    %c0_i32_1 = arith.constant 0 : i32
    return %c0_i32, %c0_i32_0 : i32, i32
  }
  func.func @transform_10(%arg0: i32, %arg1: i32, %arg2: i32, %arg3: memref<2xi32, #tpu.memory_space<smem>>) -> (i32, i32) {
    %c0_i32 = arith.constant 0 : i32
    %c0_i32_0 = arith.constant 0 : i32
    %c0_i32_1 = arith.constant 0 : i32
    return %c0_i32, %c0_i32_0 : i32, i32
  }
  func.func @transform_11(%arg0: i32, %arg1: i32, %arg2: i32, %arg3: memref<2xi32, #tpu.memory_space<smem>>) -> (i32, i32) {
    %c0_i32 = arith.constant 0 : i32
    %c0_i32_0 = arith.constant 0 : i32
    %c0_i32_1 = arith.constant 0 : i32
    return %c0_i32, %c0_i32_0 : i32, i32
  }
  func.func @transform_12(%arg0: i32, %arg1: i32, %arg2: i32, %arg3: memref<2xi32, #tpu.memory_space<smem>>) -> (i32, i32, i32) {
    %c0_i32 = arith.constant 0 : i32
    %c0_i32_0 = arith.constant 0 : i32
    return %arg0, %c0_i32, %arg1 : i32, i32, i32
  }
  func.func @transform_13(%arg0: i32, %arg1: i32, %arg2: i32, %arg3: memref<2xi32, #tpu.memory_space<smem>>) -> (i32, i32, i32) {
    %c0_i32 = arith.constant 0 : i32
    %c0_i32_0 = arith.constant 0 : i32
    return %arg0, %c0_i32, %arg1 : i32, i32, i32
  }
  func.func @transform_14(%arg0: i32, %arg1: i32, %arg2: i32, %arg3: memref<2xi32, #tpu.memory_space<smem>>) -> (i32, i32, i32) {
    %c0_i32 = arith.constant 0 : i32
    %c0_i32_0 = arith.constant 0 : i32
    return %arg0, %c0_i32, %arg1 : i32, i32, i32
  }
  func.func @transform_15(%arg0: i32, %arg1: i32, %arg2: i32, %arg3: memref<2xi32, #tpu.memory_space<smem>>) -> (i32, i32, i32) {
    %c0_i32 = arith.constant 0 : i32
    %c0_i32_0 = arith.constant 0 : i32
    return %arg0, %c0_i32, %arg1 : i32, i32, i32
  }
}

</mosaic_0001>

<llo_original>
// kernel: encoder_forward.1
$region0: #{encoder_forward.1}
  #allocation0 [shape = 'u32[]', space=smem, size = 0x4, offset = 0x4, fixed_abs, tag = 'smem constant byte address 0x4 - core index']
  #allocation1 [shape = 'u32[144,128]{1,0:T(1,128)}', space=vmem, size = 0x12000, scoped, tag = 'internal scratch']
  #allocation2 [shape = 'bf16[32,172]{1,0:T(16,128)(2,1)}', space=vmem, size = 0x4000, scoped, tag = 'scratch operand']
  #allocation3 [shape = 'f32[32,156]{1,0:T(8,128)}', space=vmem, size = 0x8000, scoped, tag = 'scratch operand']
  #allocation4 [shape = 'f32[32,156]{1,0:T(8,128)}', space=vmem, size = 0x8000, scoped, tag = 'scratch operand']
  #allocation5 [shape = 'bf16[160,156]{1,0:T(16,128)(2,1)}', space=vmem, size = 0x14000, scoped, tag = 'scratch operand']
  #allocation6 [shape = 's32[1]{0}', space=sflag, size = 0x4, scoped, tag = 'scoped memory for encoder_forward.1']
  #allocation7 [shape = 'u8[512]{0}', space=smem, size = 0x200, scoped, tag = 'prefetched SMEM operand 0']
  %s0 = inlined_call_operand.vmem [shape: s32[2], index: 0, kind: input, shape index: {}]
  %s1 = inlined_call_operand.vmem [shape: bf16[2,1,4,156], index: 1, kind: input, shape index: {}]
  %s2 = inlined_call_operand.vmem [shape: f32[2,4,128], index: 2, kind: input, shape index: {}]
  %s3 = inlined_call_operand.vmem [shape: bf16[32,4], index: 3, kind: input, shape index: {}]
  %s4 = inlined_call_operand.vmem [shape: f32[32,1], index: 4, kind: input, shape index: {}]
  %s5 = inlined_call_operand.vmem [shape: bf16[3,64,160], index: 5, kind: input, shape index: {}]
  %s6 = inlined_call_operand.vmem [shape: f32[3,64,1], index: 6, kind: input, shape index: {}]
  %s7 = inlined_call_operand.vmem [shape: bf16[3,64,32], index: 7, kind: input, shape index: {}]
  %s8 = inlined_call_operand.vmem [shape: f32[3,64,1], index: 8, kind: input, shape index: {}]
  %s9 = inlined_call_operand.vmem [shape: bf16[4,32], index: 9, kind: input, shape index: {}]
  %s10 = inlined_call_operand.vmem [shape: f32[4,1], index: 10, kind: input, shape index: {}]
  %s11 = inlined_call_operand.vmem [shape: bf16[4,32], index: 11, kind: input, shape index: {}]
  %s12 = inlined_call_operand.vmem [shape: f32[4,1], index: 12, kind: input, shape index: {}]
  %s13 = inlined_call_operand.hbm [shape: f32[2,4,128], index: 13, kind: output, shape index: {0}]
  %s14 = inlined_call_operand.hbm [shape: f32[2,4,128], index: 14, kind: output, shape index: {1}]
  %s15 = inlined_call_operand.hbm [shape: f32[2,4,128], index: 15, kind: output, shape index: {2}]
  %s16 = inlined_call_operand.hbm [shape: f32[2,1,128], index: 16, kind: output, shape index: {3}]
  %17 = xla_tuple %s13, %s14, %s15, %s16
  %s18 = sld [smem:[#allocation0]]
  $region129: #{encoder_forward.1} parent=0
    _
  %s20 = ssub.s32 1, %s18
  %s21 = scalar_select 0, %s20, %s18
  %s22 = sshll.u32 %s0, 4
  %s23 = int_to_ptr.vmem [resolvable:$true] %s22
  %25 = dma.vmem_to_smem %s23, 16, [#allocation7], [#allocation6]
  %26 = dma.done [#allocation6], 16
  %27 = sfence
  $region1: #{encoder_forward.1} parent=0
    #allocation8 [shape = 'u8[4096]{0}', space=vmem, size = 0x1000, scoped, tag = 'output window, operand 0']
    #allocation9 [shape = 's32[2]{0}', space=sflag, size = 0x8, scoped, tag = 'scoped memory for encoder_forward.1']
    #allocation10 [shape = 'u8[4096]{0}', space=vmem, size = 0x1000, scoped, tag = 'output window, operand 1']
    #allocation11 [shape = 's32[2]{0}', space=sflag, size = 0x8, scoped, tag = 'scoped memory for encoder_forward.1']
    #allocation12 [shape = 'u8[4096]{0}', space=vmem, size = 0x1000, scoped, tag = 'output window, operand 2']
    #allocation13 [shape = 'u8[1024]{0}', space=vmem, size = 0x400, scoped, tag = 'output window, operand 3']
    #allocation14 [shape = 's32[2]{0}', space=sflag, size = 0x8, scoped, tag = 'scoped memory for encoder_forward.1']
    %28 = vsyncpa [#allocation9], 0
    %s29 = scalar_lea.sflag [#allocation9], 1
    %30 = vsyncpa %s29, 0
    %31 = vsyncpa [#allocation11], 0
    %s32 = scalar_lea.sflag [#allocation11], 1
    %33 = vsyncpa %s32, 0
    %34 = vsyncpa [#allocation14], 0
    %s35 = scalar_lea.sflag [#allocation14], 1
    %36 = vsyncpa %s35, 0
    loop: start=0, step=1, limit=8
    $region2: #{encoder_forward.1} parent=1 // loop_pre_header
      _
    $region3: #{encoder_forward.1} parent=1 // loop_header
      %s38 = sphi 0, %s42
      %p39 = scmp.ge.s32.totalorder %s38, 8
      %s45 = sphi 0, %s64
      %s46 = sphi 0, %s60
      %s47 = sphi 0, %s56
      %s48 = sphi 0, %s45
      %s49 = sphi 0, %s46
      %s50 = sphi 0, %s47
      %s51 = sphi 0, %s48
      %s52 = sphi 0, %s49
      %s53 = sphi 0, %s50
      %s69 = sphi 0, %s71
      %s72 = sphi 0, %s69
      %s73 = sphi 0, %s72
      %s89 = sphi 0, %s73
      %s97 = sphi 0, %s99
      %s100 = sphi 0, %s97
      %s101 = sphi 0, %s100
      %s117 = sphi 0, %s101
      %s121 = sphi 0, %s121
      %s123 = sphi 0, %s121
      %s124 = sphi 0, %s123
      %s138 = sphi 0, %s124
      %s142 = sphi 0, %s142
      %s144 = sphi 0, %s142
      %s145 = sphi 0, %s144
      %s159 = sphi 0, %s145
      %s165 = sphi 0, %s167
      %s168 = sphi 0, %s165
      %s169 = sphi 0, %s168
      %s185 = sphi 0, %s169
      %s191 = sphi 0, %s193
      %s194 = sphi 0, %s191
      %s195 = sphi 0, %s194
      %s211 = sphi 0, %s195
      %s217 = sphi 0, %s219
      %s220 = sphi 0, %s217
      %s221 = sphi 0, %s220
      %s237 = sphi 0, %s221
      %s243 = sphi 0, %s245
      %s246 = sphi 0, %s243
      %s247 = sphi 0, %s246
      %s263 = sphi 0, %s247
      %s267 = sphi 0, %s267
      %s269 = sphi 0, %s267
      %s270 = sphi 0, %s269
      %s284 = sphi 0, %s270
      %s288 = sphi 0, %s288
      %s290 = sphi 0, %s288
      %s291 = sphi 0, %s290
      %s305 = sphi 0, %s291
      %s309 = sphi 0, %s309
      %s311 = sphi 0, %s309
      %s312 = sphi 0, %s311
      %s326 = sphi 0, %s312
      %s330 = sphi 0, %s330
      %s332 = sphi 0, %s330
      %s333 = sphi 0, %s332
      %s347 = sphi 0, %s333
      %s355 = sphi 0, %s357
      %s358 = sphi 0, %s355
      %s359 = sphi 0, %s358
      %s375 = sphi 0, %s359
      %s383 = sphi 0, %s385
      %s386 = sphi 0, %s383
      %s387 = sphi 0, %s386
      %s403 = sphi 0, %s387
      %s411 = sphi 0, %s413
      %s414 = sphi 0, %s411
      %s415 = sphi 0, %s414
      %s431 = sphi 0, %s415
      %s439 = sphi 0, %s441
      %s442 = sphi 0, %s439
      %s443 = sphi 0, %s442
      %s459 = sphi 0, %s443
    $region4: #{encoder_forward.1} parent=1 // loop_header_branch
      %41 = sbr.rel (%p39) target = $region8
    $region5: #{encoder_forward.1} parent=1 // loop_body
      %s43 = ssub.s32 %s38, 1
      %s44 = ssub.s32 %s38, 2
      %s54 = sadd.s32 1, %s47
      %p55 = scmp.ge.s32.totalorder %s54, 3
      %s56 = scalar_select %p55, 0, %s54
      %s57 = sadd.s32 1, %s46
      %s58 = scalar_select %p55, %s57, %s46
      %p59 = scmp.ge.s32.totalorder %s58, 1
      %s60 = scalar_select %p59, 0, %s58
      %s61 = sadd.s32 1, %s45
      %s62 = scalar_select %p59, %s61, %s45
      %p63 = scmp.ge.s32.totalorder %s62, 2
      %s64 = scalar_select %p63, 0, %s62
      %s65 = ssub.s32 %s45, %s64
      %s66 = ssub.s32 %s46, %s60
      %s67 = sor.u32 %s65, %s66
      %p68 = scmp.eq.s32.totalorder %s67, 0
      %s70 = sadd.s32 %s69, 1
      %s71 = scalar_select %p68, %s69, %s70
      %p74 = pneg %p68
      %p75 = scmp.eq.s32.totalorder %s38, 5
      %p76 = por %p74, %p75
      %p77 = scmp.ne.s32.totalorder %s69, %s72
      %p78 = scmp.eq.s32.totalorder %s38, 0
      %p79 = por %p77, %p78
      %p80 = scmp.ne.s32.totalorder %s69, %s72
      %p81 = scmp.eq.s32.totalorder %s43, 5
      %p82 = por %p80, %p81
      %p83 = scmp.ne.s32.totalorder %s72, %s73
      %p84 = scmp.eq.s32.totalorder %s43, 0
      %p85 = por %p83, %p84
      %p86 = scmp.ne.s32.totalorder %s72, %s73
      %p87 = scmp.eq.s32.totalorder %s44, 5
      %p88 = por %p86, %p87
      %p90 = scmp.ne.s32.totalorder %s73, %s89
      %p91 = scmp.eq.s32.totalorder %s44, 0
      %p92 = por %p90, %p91
      %s93 = ssub.s32 %s45, %s64
      %s94 = ssub.s32 %s46, %s60
      %s95 = sor.u32 %s93, %s94
      %p96 = scmp.eq.s32.totalorder %s95, 0
      %s98 = sadd.s32 %s97, 1
      %s99 = scalar_select %p96, %s97, %s98
      %p102 = pneg %p96
      %p103 = scmp.eq.s32.totalorder %s38, 5
      %p104 = por %p102, %p103
      %p105 = scmp.ne.s32.totalorder %s97, %s100
      %p106 = scmp.eq.s32.totalorder %s38, 0
      %p107 = por %p105, %p106
      %p108 = scmp.ne.s32.totalorder %s97, %s100
      %p109 = scmp.eq.s32.totalorder %s43, 5
      %p110 = por %p108, %p109
      %p111 = scmp.ne.s32.totalorder %s100, %s101
      %p112 = scmp.eq.s32.totalorder %s43, 0
      %p113 = por %p111, %p112
      %p114 = scmp.ne.s32.totalorder %s100, %s101
      %p115 = scmp.eq.s32.totalorder %s44, 5
      %p116 = por %p114, %p115
      %p118 = scmp.ne.s32.totalorder %s101, %s117
      %p119 = scmp.eq.s32.totalorder %s44, 0
      %p120 = por %p118, %p119
      %s122 = sadd.s32 %s121, 1
      %p125 = scmp.eq.s32.totalorder %s38, 5
      %p126 = scmp.ne.s32.totalorder %s121, %s123
      %p127 = scmp.eq.s32.totalorder %s38, 0
      %p128 = por %p126, %p127
      %p129 = scmp.ne.s32.totalorder %s121, %s123
      %p130 = scmp.eq.s32.totalorder %s43, 5
      %p131 = por %p129, %p130
      %p132 = scmp.ne.s32.totalorder %s123, %s124
      %p133 = scmp.eq.s32.totalorder %s43, 0
      %p134 = por %p132, %p133
      %p135 = scmp.ne.s32.totalorder %s123, %s124
      %p136 = scmp.eq.s32.totalorder %s44, 5
      %p137 = por %p135, %p136
      %p139 = scmp.ne.s32.totalorder %s124, %s138
      %p140 = scmp.eq.s32.totalorder %s44, 0
      %p141 = por %p139, %p140
      %s143 = sadd.s32 %s142, 1
      %p146 = scmp.eq.s32.totalorder %s38, 5
      %p147 = scmp.ne.s32.totalorder %s142, %s144
      %p148 = scmp.eq.s32.totalorder %s38, 0
      %p149 = por %p147, %p148
      %p150 = scmp.ne.s32.totalorder %s142, %s144
      %p151 = scmp.eq.s32.totalorder %s43, 5
      %p152 = por %p150, %p151
      %p153 = scmp.ne.s32.totalorder %s144, %s145
      %p154 = scmp.eq.s32.totalorder %s43, 0
      %p155 = por %p153, %p154
      %p156 = scmp.ne.s32.totalorder %s144, %s145
      %p157 = scmp.eq.s32.totalorder %s44, 5
      %p158 = por %p156, %p157
      %p160 = scmp.ne.s32.totalorder %s145, %s159
      %p161 = scmp.eq.s32.totalorder %s44, 0
      %p162 = por %p160, %p161
      %s163 = ssub.s32 %s47, %s56
      %p164 = scmp.eq.s32.totalorder %s163, 0
      %s166 = sadd.s32 %s165, 1
      %s167 = scalar_select %p164, %s165, %s166
      %p170 = pneg %p164
      %p171 = scmp.eq.s32.totalorder %s38, 5
      %p172 = por %p170, %p171
      %p173 = scmp.ne.s32.totalorder %s165, %s168
      %p174 = scmp.eq.s32.totalorder %s38, 0
      %p175 = por %p173, %p174
      %p176 = scmp.ne.s32.totalorder %s165, %s168
      %p177 = scmp.eq.s32.totalorder %s43, 5
      %p178 = por %p176, %p177
      %p179 = scmp.ne.s32.totalorder %s168, %s169
      %p180 = scmp.eq.s32.totalorder %s43, 0
      %p181 = por %p179, %p180
      %p182 = scmp.ne.s32.totalorder %s168, %s169
      %p183 = scmp.eq.s32.totalorder %s44, 5
      %p184 = por %p182, %p183
      %p186 = scmp.ne.s32.totalorder %s169, %s185
      %p187 = scmp.eq.s32.totalorder %s44, 0
      %p188 = por %p186, %p187
      %s189 = ssub.s32 %s47, %s56
      %p190 = scmp.eq.s32.totalorder %s189, 0
      %s192 = sadd.s32 %s191, 1
      %s193 = scalar_select %p190, %s191, %s192
      %p196 = pneg %p190
      %p197 = scmp.eq.s32.totalorder %s38, 5
      %p198 = por %p196, %p197
      %p199 = scmp.ne.s32.totalorder %s191, %s194
      %p200 = scmp.eq.s32.totalorder %s38, 0
      %p201 = por %p199, %p200
      %p202 = scmp.ne.s32.totalorder %s191, %s194
      %p203 = scmp.eq.s32.totalorder %s43, 5
      %p204 = por %p202, %p203
      %p205 = scmp.ne.s32.totalorder %s194, %s195
      %p206 = scmp.eq.s32.totalorder %s43, 0
      %p207 = por %p205, %p206
      %p208 = scmp.ne.s32.totalorder %s194, %s195
      %p209 = scmp.eq.s32.totalorder %s44, 5
      %p210 = por %p208, %p209
      %p212 = scmp.ne.s32.totalorder %s195, %s211
      %p213 = scmp.eq.s32.totalorder %s44, 0
      %p214 = por %p212, %p213
      %s215 = ssub.s32 %s47, %s56
      %p216 = scmp.eq.s32.totalorder %s215, 0
      %s218 = sadd.s32 %s217, 1
      %s219 = scalar_select %p216, %s217, %s218
      %p222 = pneg %p216
      %p223 = scmp.eq.s32.totalorder %s38, 5
      %p224 = por %p222, %p223
      %p225 = scmp.ne.s32.totalorder %s217, %s220
      %p226 = scmp.eq.s32.totalorder %s38, 0
      %p227 = por %p225, %p226
      %p228 = scmp.ne.s32.totalorder %s217, %s220
      %p229 = scmp.eq.s32.totalorder %s43, 5
      %p230 = por %p228, %p229
      %p231 = scmp.ne.s32.totalorder %s220, %s221
      %p232 = scmp.eq.s32.totalorder %s43, 0
      %p233 = por %p231, %p232
      %p234 = scmp.ne.s32.totalorder %s220, %s221
      %p235 = scmp.eq.s32.totalorder %s44, 5
      %p236 = por %p234, %p235
      %p238 = scmp.ne.s32.totalorder %s221, %s237
      %p239 = scmp.eq.s32.totalorder %s44, 0
      %p240 = por %p238, %p239
      %s241 = ssub.s32 %s47, %s56
      %p242 = scmp.eq.s32.totalorder %s241, 0
      %s244 = sadd.s32 %s243, 1
      %s245 = scalar_select %p242, %s243, %s244
      %p248 = pneg %p242
      %p249 = scmp.eq.s32.totalorder %s38, 5
      %p250 = por %p248, %p249
      %p251 = scmp.ne.s32.totalorder %s243, %s246
      %p252 = scmp.eq.s32.totalorder %s38, 0
      %p253 = por %p251, %p252
      %p254 = scmp.ne.s32.totalorder %s243, %s246
      %p255 = scmp.eq.s32.totalorder %s43, 5
      %p256 = por %p254, %p255
      %p257 = scmp.ne.s32.totalorder %s246, %s247
      %p258 = scmp.eq.s32.totalorder %s43, 0
      %p259 = por %p257, %p258
      %p260 = scmp.ne.s32.totalorder %s246, %s247
      %p261 = scmp.eq.s32.totalorder %s44, 5
      %p262 = por %p260, %p261
      %p264 = scmp.ne.s32.totalorder %s247, %s263
      %p265 = scmp.eq.s32.totalorder %s44, 0
      %p266 = por %p264, %p265
      %s268 = sadd.s32 %s267, 1
      %p271 = scmp.eq.s32.totalorder %s38, 5
      %p272 = scmp.ne.s32.totalorder %s267, %s269
      %p273 = scmp.eq.s32.totalorder %s38, 0
      %p274 = por %p272, %p273
      %p275 = scmp.ne.s32.totalorder %s267, %s269
      %p276 = scmp.eq.s32.totalorder %s43, 5
      %p277 = por %p275, %p276
      %p278 = scmp.ne.s32.totalorder %s269, %s270
      %p279 = scmp.eq.s32.totalorder %s43, 0
      %p280 = por %p278, %p279
      %p281 = scmp.ne.s32.totalorder %s269, %s270
      %p282 = scmp.eq.s32.totalorder %s44, 5
      %p283 = por %p281, %p282
      %p285 = scmp.ne.s32.totalorder %s270, %s284
      %p286 = scmp.eq.s32.totalorder %s44, 0
      %p287 = por %p285, %p286
      %s289 = sadd.s32 %s288, 1
      %p292 = scmp.eq.s32.totalorder %s38, 5
      %p293 = scmp.ne.s32.totalorder %s288, %s290
      %p294 = scmp.eq.s32.totalorder %s38, 0
      %p295 = por %p293, %p294
      %p296 = scmp.ne.s32.totalorder %s288, %s290
      %p297 = scmp.eq.s32.totalorder %s43, 5
      %p298 = por %p296, %p297
      %p299 = scmp.ne.s32.totalorder %s290, %s291
      %p300 = scmp.eq.s32.totalorder %s43, 0
      %p301 = por %p299, %p300
      %p302 = scmp.ne.s32.totalorder %s290, %s291
      %p303 = scmp.eq.s32.totalorder %s44, 5
      %p304 = por %p302, %p303
      %p306 = scmp.ne.s32.totalorder %s291, %s305
      %p307 = scmp.eq.s32.totalorder %s44, 0
      %p308 = por %p306, %p307
      %s310 = sadd.s32 %s309, 1
      %p313 = scmp.eq.s32.totalorder %s38, 5
      %p314 = scmp.ne.s32.totalorder %s309, %s311
      %p315 = scmp.eq.s32.totalorder %s38, 0
      %p316 = por %p314, %p315
      %p317 = scmp.ne.s32.totalorder %s309, %s311
      %p318 = scmp.eq.s32.totalorder %s43, 5
      %p319 = por %p317, %p318
      %p320 = scmp.ne.s32.totalorder %s311, %s312
      %p321 = scmp.eq.s32.totalorder %s43, 0
      %p322 = por %p320, %p321
      %p323 = scmp.ne.s32.totalorder %s311, %s312
      %p324 = scmp.eq.s32.totalorder %s44, 5
      %p325 = por %p323, %p324
      %p327 = scmp.ne.s32.totalorder %s312, %s326
      %p328 = scmp.eq.s32.totalorder %s44, 0
      %p329 = por %p327, %p328
      %s331 = sadd.s32 %s330, 1
      %p334 = scmp.eq.s32.totalorder %s38, 5
      %p335 = scmp.ne.s32.totalorder %s330, %s332
      %p336 = scmp.eq.s32.totalorder %s38, 0
      %p337 = por %p335, %p336
      %p338 = scmp.ne.s32.totalorder %s330, %s332
      %p339 = scmp.eq.s32.totalorder %s43, 5
      %p340 = por %p338, %p339
      %p341 = scmp.ne.s32.totalorder %s332, %s333
      %p342 = scmp.eq.s32.totalorder %s43, 0
      %p343 = por %p341, %p342
      %p344 = scmp.ne.s32.totalorder %s332, %s333
      %p345 = scmp.eq.s32.totalorder %s44, 5
      %p346 = por %p344, %p345
      %p348 = scmp.ne.s32.totalorder %s333, %s347
      %p349 = scmp.eq.s32.totalorder %s44, 0
      %p350 = por %p348, %p349
      %s351 = ssub.s32 %s45, %s64
      %s352 = ssub.s32 %s46, %s60
      %s353 = sor.u32 %s351, %s352
      %p354 = scmp.eq.s32.totalorder %s353, 0
      %s356 = sadd.s32 %s355, 1
      %s357 = scalar_select %p354, %s355, %s356
      %p360 = pneg %p354
      %p361 = scmp.eq.s32.totalorder %s38, 5
      %p362 = por %p360, %p361
      %p363 = scmp.ne.s32.totalorder %s355, %s358
      %p364 = scmp.eq.s32.totalorder %s38, 0
      %p365 = por %p363, %p364
      %p366 = scmp.ne.s32.totalorder %s355, %s358
      %p367 = scmp.eq.s32.totalorder %s43, 5
      %p368 = por %p366, %p367
      %p369 = scmp.ne.s32.totalorder %s358, %s359
      %p370 = scmp.eq.s32.totalorder %s43, 0
      %p371 = por %p369, %p370
      %p372 = scmp.ne.s32.totalorder %s358, %s359
      %p373 = scmp.eq.s32.totalorder %s44, 5
      %p374 = por %p372, %p373
      %p376 = scmp.ne.s32.totalorder %s359, %s375
      %p377 = scmp.eq.s32.totalorder %s44, 0
      %p378 = por %p376, %p377
      %s379 = ssub.s32 %s45, %s64
      %s380 = ssub.s32 %s46, %s60
      %s381 = sor.u32 %s379, %s380
      %p382 = scmp.eq.s32.totalorder %s381, 0
      %s384 = sadd.s32 %s383, 1
      %s385 = scalar_select %p382, %s383, %s384
      %p388 = pneg %p382
      %p389 = scmp.eq.s32.totalorder %s38, 5
      %p390 = por %p388, %p389
      %p391 = scmp.ne.s32.totalorder %s383, %s386
      %p392 = scmp.eq.s32.totalorder %s38, 0
      %p393 = por %p391, %p392
      %p394 = scmp.ne.s32.totalorder %s383, %s386
      %p395 = scmp.eq.s32.totalorder %s43, 5
      %p396 = por %p394, %p395
      %p397 = scmp.ne.s32.totalorder %s386, %s387
      %p398 = scmp.eq.s32.totalorder %s43, 0
      %p399 = por %p397, %p398
      %p400 = scmp.ne.s32.totalorder %s386, %s387
      %p401 = scmp.eq.s32.totalorder %s44, 5
      %p402 = por %p400, %p401
      %p404 = scmp.ne.s32.totalorder %s387, %s403
      %p405 = scmp.eq.s32.totalorder %s44, 0
      %p406 = por %p404, %p405
      %s407 = ssub.s32 %s45, %s64
      %s408 = ssub.s32 %s46, %s60
      %s409 = sor.u32 %s407, %s408
      %p410 = scmp.eq.s32.totalorder %s409, 0
      %s412 = sadd.s32 %s411, 1
      %s413 = scalar_select %p410, %s411, %s412
      %p416 = pneg %p410
      %p417 = scmp.eq.s32.totalorder %s38, 5
      %p418 = por %p416, %p417
      %p419 = scmp.ne.s32.totalorder %s411, %s414
      %p420 = scmp.eq.s32.totalorder %s38, 0
      %p421 = por %p419, %p420
      %p422 = scmp.ne.s32.totalorder %s411, %s414
      %p423 = scmp.eq.s32.totalorder %s43, 5
      %p424 = por %p422, %p423
      %p425 = scmp.ne.s32.totalorder %s414, %s415
      %p426 = scmp.eq.s32.totalorder %s43, 0
      %p427 = por %p425, %p426
      %p428 = scmp.ne.s32.totalorder %s414, %s415
      %p429 = scmp.eq.s32.totalorder %s44, 5
      %p430 = por %p428, %p429
      %p432 = scmp.ne.s32.totalorder %s415, %s431
      %p433 = scmp.eq.s32.totalorder %s44, 0
      %p434 = por %p432, %p433
      %s435 = ssub.s32 %s45, %s64
      %s436 = ssub.s32 %s46, %s60
      %s437 = sor.u32 %s435, %s436
      %p438 = scmp.eq.s32.totalorder %s437, 0
      %s440 = sadd.s32 %s439, 1
      %s441 = scalar_select %p438, %s439, %s440
      %p444 = pneg %p438
      %p445 = scmp.eq.s32.totalorder %s38, 5
      %p446 = por %p444, %p445
      %p447 = scmp.ne.s32.totalorder %s439, %s442
      %p448 = scmp.eq.s32.totalorder %s38, 0
      %p449 = por %p447, %p448
      %p450 = scmp.ne.s32.totalorder %s439, %s442
      %p451 = scmp.eq.s32.totalorder %s43, 5
      %p452 = por %p450, %p451
      %p453 = scmp.ne.s32.totalorder %s442, %s443
      %p454 = scmp.eq.s32.totalorder %s43, 0
      %p455 = por %p453, %p454
      %p456 = scmp.ne.s32.totalorder %s442, %s443
      %p457 = scmp.eq.s32.totalorder %s44, 5
      %p458 = por %p456, %p457
      %p460 = scmp.ne.s32.totalorder %s443, %s459
      %p461 = scmp.eq.s32.totalorder %s44, 0
      %p462 = por %p460, %p461
      %p463 = scmp.le.s32.totalorder 1, %s38
      %p464 = scmp.lt.s32.totalorder %s38, 7
      %p465 = pnand %p463, %p464
      %p466 = pneg %p465
      // Predicated region
      $region9: #{encoder_forward.1} parent=5 // pred_check
        _
      $region10: #{encoder_forward.1} parent=5 // pred_check_branch
        %468 = sbr.rel (%p465) target = $region12
      $region11: #{encoder_forward.1} parent=5 // pred_region
        %s469 = ssub.s32 %s38, 1
        // Predicated region
        $region13: #{encoder_forward.1} parent=11 // pred_check
          %p470 = pneg %p134
        $region14: #{encoder_forward.1} parent=11 // pred_check_branch
          %472 = sbr.rel (%p470) target = $region16
        $region15: #{encoder_forward.1} parent=11 // pred_region
          _
        $region16: #{encoder_forward.1} parent=11 // pred_fallthru
          _
        // Predicated region
        $region17: #{encoder_forward.1} parent=11 // pred_check
          %p473 = pneg %p155
        $region18: #{encoder_forward.1} parent=11 // pred_check_branch
          %475 = sbr.rel (%p473) target = $region20
        $region19: #{encoder_forward.1} parent=11 // pred_region
          _
        $region20: #{encoder_forward.1} parent=11 // pred_fallthru
          _
        // Predicated region
        $region21: #{encoder_forward.1} parent=11 // pred_check
          %p476 = pneg %p280
        $region22: #{encoder_forward.1} parent=11 // pred_check_branch
          %478 = sbr.rel (%p476) target = $region24
        $region23: #{encoder_forward.1} parent=11 // pred_region
          _
        $region24: #{encoder_forward.1} parent=11 // pred_fallthru
          _
        // Predicated region
        $region25: #{encoder_forward.1} parent=11 // pred_check
          %p479 = pneg %p301
        $region26: #{encoder_forward.1} parent=11 // pred_check_branch
          %481 = sbr.rel (%p479) target = $region28
        $region27: #{encoder_forward.1} parent=11 // pred_region
          _
        $region28: #{encoder_forward.1} parent=11 // pred_fallthru
          _
        // Predicated region
        $region29: #{encoder_forward.1} parent=11 // pred_check
          %p482 = pneg %p322
        $region30: #{encoder_forward.1} parent=11 // pred_check_branch
          %484 = sbr.rel (%p482) target = $region32
        $region31: #{encoder_forward.1} parent=11 // pred_region
          _
        $region32: #{encoder_forward.1} parent=11 // pred_fallthru
          _
        // Predicated region
        $region33: #{encoder_forward.1} parent=11 // pred_check
          %p485 = pneg %p343
        $region34: #{encoder_forward.1} parent=11 // pred_check_branch
          %487 = sbr.rel (%p485) target = $region36
        $region35: #{encoder_forward.1} parent=11 // pred_region
          _
        $region36: #{encoder_forward.1} parent=11 // pred_fallthru
          _
      $region12: #{encoder_forward.1} parent=5 // pred_fallthru
        _
      %p488 = scmp.lt.s32.totalorder %s38, 6
      // Predicated region
      $region37: #{encoder_forward.1} parent=5 // pred_check
        %p489 = pneg %p488
      $region38: #{encoder_forward.1} parent=5 // pred_check_branch
        %491 = sbr.rel (%p489) target = $region40
      $region39: #{encoder_forward.1} parent=5 // pred_region
        // Predicated region
        $region41: #{encoder_forward.1} parent=39 // pred_check
          %p492 = pneg %p79
        $region42: #{encoder_forward.1} parent=39 // pred_check_branch
          %494 = sbr.rel (%p492) target = $region44
        $region43: #{encoder_forward.1} parent=39 // pred_region
          %p495 = scmp.lt.s32.totalorder %s45, 1
          %s496 = scalar_select %p495, %s45, 1
          %p497 = scmp.lt.s32.totalorder %s46, 0
          %s498 = scalar_select %p497, %s46, 0
          %s499 = smul.addr %s498, 2
          %s500 = smul.addr %s496, 2
          %s501 = sadd.s32 %s499, %s500
          %s502 = smul.addr %s501, 2
          %s503 = scalar_lea.vmem %s1, %s502
        $region44: #{encoder_forward.1} parent=39 // pred_fallthru
          _
        // Predicated region
        $region45: #{encoder_forward.1} parent=39 // pred_check
          %p504 = pneg %p107
        $region46: #{encoder_forward.1} parent=39 // pred_check_branch
          %506 = sbr.rel (%p504) target = $region48
        $region47: #{encoder_forward.1} parent=39 // pred_region
          %p507 = scmp.lt.s32.totalorder %s45, 1
          %s508 = scalar_select %p507, %s45, 1
          %p509 = scmp.lt.s32.totalorder %s46, 0
          %s510 = scalar_select %p509, %s46, 0
          %s511 = sadd.s32 %s510, %s508
          %s512 = smul.addr %s511, 4
          %s513 = scalar_lea.vmem %s2, %s512
        $region48: #{encoder_forward.1} parent=39 // pred_fallthru
          _
        // Predicated region
        $region49: #{encoder_forward.1} parent=39 // pred_check
          %p514 = pneg %p175
        $region50: #{encoder_forward.1} parent=39 // pred_check_branch
          %516 = sbr.rel (%p514) target = $region52
        $region51: #{encoder_forward.1} parent=39 // pred_region
          %p517 = scmp.lt.s32.totalorder %s47, 2
          %s518 = scalar_select %p517, %s47, 2
          %s519 = smul.addr %s518, 16
          %s520 = smul.addr %s519, 4
          %s521 = scalar_lea.vmem %s5, %s520
        $region52: #{encoder_forward.1} parent=39 // pred_fallthru
          _
        // Predicated region
        $region53: #{encoder_forward.1} parent=39 // pred_check
          %p522 = pneg %p201
        $region54: #{encoder_forward.1} parent=39 // pred_check_branch
          %524 = sbr.rel (%p522) target = $region56
        $region55: #{encoder_forward.1} parent=39 // pred_region
          %p525 = scmp.lt.s32.totalorder %s47, 2
          %s526 = scalar_select %p525, %s47, 2
          %s527 = smul.addr %s526, 8
          %s528 = smul.addr %s527, 8
          %s529 = scalar_lea.vmem %s6, %s528
        $region56: #{encoder_forward.1} parent=39 // pred_fallthru
          _
        // Predicated region
        $region57: #{encoder_forward.1} parent=39 // pred_check
          %p530 = pneg %p227
        $region58: #{encoder_forward.1} parent=39 // pred_check_branch
          %532 = sbr.rel (%p530) target = $region60
        $region59: #{encoder_forward.1} parent=39 // pred_region
          %p533 = scmp.lt.s32.totalorder %s47, 2
          %s534 = scalar_select %p533, %s47, 2
          %s535 = smul.addr %s534, 8
          %s536 = smul.addr %s535, 4
          %s537 = scalar_lea.vmem %s7, %s536
        $region60: #{encoder_forward.1} parent=39 // pred_fallthru
          _
        // Predicated region
        $region61: #{encoder_forward.1} parent=39 // pred_check
          %p538 = pneg %p253
        $region62: #{encoder_forward.1} parent=39 // pred_check_branch
          %540 = sbr.rel (%p538) target = $region64
        $region63: #{encoder_forward.1} parent=39 // pred_region
          %p541 = scmp.lt.s32.totalorder %s47, 2
          %s542 = scalar_select %p541, %s47, 2
          %s543 = smul.addr %s542, 8
          %s544 = smul.addr %s543, 8
          %s545 = scalar_lea.vmem %s8, %s544
        $region64: #{encoder_forward.1} parent=39 // pred_fallthru
          _
      $region40: #{encoder_forward.1} parent=5 // pred_fallthru
        _
      %p546 = scmp.le.s32.totalorder 1, %s38
      %p547 = scmp.lt.s32.totalorder %s38, 7
      %p548 = pnand %p546, %p547
      %p549 = pneg %p548
      // Predicated region
      $region65: #{encoder_forward.1} parent=5 // pred_check
        _
      $region66: #{encoder_forward.1} parent=5 // pred_check_branch
        %551 = sbr.rel (%p548) target = $region68
      $region67: #{encoder_forward.1} parent=5 // pred_region
        %s552 = ssub.s32 %s38, 1
        %p553 = scmp.lt.s32.totalorder %s48, 1
        %s554 = scalar_select %p553, %s48, 1
        %p555 = scmp.lt.s32.totalorder %s49, 0
        %s556 = scalar_select %p555, %s49, 0
        %s557 = smul.addr %s556, 2
        %s558 = smul.addr %s554, 2
        %s559 = sadd.s32 %s557, %s558
        %s560 = smul.addr %s559, 2
        %s561 = scalar_lea.vmem %s1, %s560
        %p562 = pneg %p85
        %p563 = pneg %p82
        %p564 = scmp.lt.s32.totalorder %s48, 1
        %s565 = scalar_select %p564, %s48, 1
        %p566 = scmp.lt.s32.totalorder %s49, 0
        %s567 = scalar_select %p566, %s49, 0
        %s568 = sadd.s32 %s567, %s565
        %s569 = smul.addr %s568, 4
        %s570 = scalar_lea.vmem %s2, %s569
        %p571 = pneg %p113
        %p572 = pneg %p110
        %p573 = pneg %p134
        %p574 = pneg %p131
        %p575 = pneg %p155
        %p576 = pneg %p152
        %p577 = scmp.lt.s32.totalorder %s50, 2
        %s578 = scalar_select %p577, %s50, 2
        %s579 = smul.addr %s578, 16
        %s580 = smul.addr %s579, 4
        %s581 = scalar_lea.vmem %s5, %s580
        %p582 = pneg %p181
        %p583 = pneg %p178
        %p584 = scmp.lt.s32.totalorder %s50, 2
        %s585 = scalar_select %p584, %s50, 2
        %s586 = smul.addr %s585, 8
        %s587 = smul.addr %s586, 8
        %s588 = scalar_lea.vmem %s6, %s587
        %p589 = pneg %p207
        %p590 = pneg %p204
        %p591 = scmp.lt.s32.totalorder %s50, 2
        %s592 = scalar_select %p591, %s50, 2
        %s593 = smul.addr %s592, 8
        %s594 = smul.addr %s593, 4
        %s595 = scalar_lea.vmem %s7, %s594
        %p596 = pneg %p233
        %p597 = pneg %p230
        %p598 = scmp.lt.s32.totalorder %s50, 2
        %s599 = scalar_select %p598, %s50, 2
        %s600 = smul.addr %s599, 8
        %s601 = smul.addr %s600, 8
        %s602 = scalar_lea.vmem %s8, %s601
        %p603 = pneg %p259
        %p604 = pneg %p256
        %p605 = pneg %p280
        %p606 = pneg %p277
        %p607 = pneg %p301
        %p608 = pneg %p298
        %p609 = pneg %p322
        %p610 = pneg %p319
        %p611 = pneg %p343
        %p612 = pneg %p340
        %p613 = pneg %p371
        %p614 = pneg %p368
        %s615 = sand.u32 %s358, 1
        %s616 = scalar_lea.sflag [#allocation9], %s615
        %s617 = sand.u32 %s358, 1
        %s618 = smul.addr %s617, 4
        %s619 = scalar_lea.vmem [#allocation8], %s618
        %p620 = pneg %p399
        %p621 = pneg %p396
        %s622 = sand.u32 %s43, 1
        %s623 = scalar_lea.sflag [#allocation11], %s622
        %s624 = sand.u32 %s386, 1
        %s625 = smul.addr %s624, 4
        %s626 = scalar_lea.vmem [#allocation10], %s625
        %p627 = pneg %p427
        %p628 = pneg %p424
        %s629 = sand.u32 %s43, 1
        %s630 = scalar_lea.sflag [#allocation11], %s629
        %s631 = sand.u32 %s414, 1
        %s632 = smul.addr %s631, 4
        %s633 = scalar_lea.vmem [#allocation12], %s632
        %p634 = pneg %p455
        %p635 = pneg %p452
        %s636 = sand.u32 %s442, 1
        %s637 = scalar_lea.sflag [#allocation14], %s636
        %s638 = sand.u32 %s442, 1
        %s639 = scalar_lea.vmem [#allocation13], %s638
        %p640 = scmp.lt.s32.totalorder %s48, 1
        %s641 = scalar_select %p640, %s48, 1
        %p642 = scmp.lt.s32.totalorder %s49, 0
        %s643 = scalar_select %p642, %s49, 0
        %s644 = smul.addr %s643, 2
        %s645 = smul.addr %s641, 2
        %s646 = sadd.s32 %s644, %s645
        %s647 = smul.addr %s646, 2
        %s648 = scalar_lea.vmem %s1, %s647
        %p649 = scmp.lt.s32.totalorder %s48, 1
        %s650 = scalar_select %p649, %s48, 1
        %p651 = scmp.lt.s32.totalorder %s49, 0
        %s652 = scalar_select %p651, %s49, 0
        %s653 = sadd.s32 %s652, %s650
        %s654 = smul.addr %s653, 4
        %s655 = scalar_lea.vmem %s2, %s654
        %p656 = scmp.lt.s32.totalorder %s50, 2
        %s657 = scalar_select %p656, %s50, 2
        %s658 = smul.addr %s657, 16
        %s659 = smul.addr %s658, 4
        %s660 = scalar_lea.vmem %s5, %s659
        %p661 = scmp.lt.s32.totalorder %s50, 2
        %s662 = scalar_select %p661, %s50, 2
        %s663 = smul.addr %s662, 8
        %s664 = smul.addr %s663, 8
        %s665 = scalar_lea.vmem %s6, %s664
        %p666 = scmp.lt.s32.totalorder %s50, 2
        %s667 = scalar_select %p666, %s50, 2
        %s668 = smul.addr %s667, 8
        %s669 = smul.addr %s668, 4
        %s670 = scalar_lea.vmem %s7, %s669
        %p671 = scmp.lt.s32.totalorder %s50, 2
        %s672 = scalar_select %p671, %s50, 2
        %s673 = smul.addr %s672, 8
        %s674 = smul.addr %s673, 8
        %s675 = scalar_lea.vmem %s8, %s674
        %s677 = sld [smem:[#allocation7 + %s48]]
        %s678 = smul.u32 %s49, 128
        %s679 = ssub.s32 %s678, 14
        %v680 = vlaneseq
        %v681 = vand.u32 %v680, 127
        %v682 = vadd.s32 %v681, 128
        %v683 = vstv %s679
        %v684 = vadd.s32 %v683, %v681
        %v685 = vadd.s32 %v683, %v682
        %vm686 = vcmp.ge.s32.totalorder %v684, 0
        %vm687 = vcmp.ge.s32.totalorder %v685, 0
        %v688 = vstv %s677
        %vm689 = vcmp.lt.s32.totalorder %v684, %v688
        %vm690 = vcmp.lt.s32.totalorder %v685, %v688
        %vm691 = vmand %vm686, %vm689
        %vm692 = vmand %vm687, %vm690
        %v693 = vsel %vm691, 1.0, 0.0
        %v694 = vsel %vm692, 1.0, 0.0
        %p695 = scmp.eq.s32.totalorder %s50, 0
        // Predicated region
        $region69: #{encoder_forward.1} parent=67 // pred_check
          %p696 = pneg %p695
        $region70: #{encoder_forward.1} parent=67 // pred_check_branch
          %698 = sbr.rel (%p696) target = $region72
        $region71: #{encoder_forward.1} parent=67 // pred_region
          %699 = vst [vmem:[#allocation2] sm:$0xff] 0
          %vm700 = vcmask 359424
          %701 = vst.msk [vmem:[#allocation2 + $0x8] sm:$0xff] %vm700, 0
          %702 = vst [vmem:[#allocation2 + $0x10] sm:$0xff] 0
          %703 = vst.msk [vmem:[#allocation2 + $0x18] sm:$0xff] %vm700, 0
          %704 = vst [vmem:[#allocation4] sm:$0xff] 0.0
          %vm705 = vcmask 228352
          %706 = vst.msk [vmem:[#allocation4 + $0x8] sm:$0xff] %vm705, 0.0
          %707 = vst [vmem:[#allocation4 + $0x10] sm:$0xff] 0.0
          %708 = vst.msk [vmem:[#allocation4 + $0x18] sm:$0xff] %vm705, 0.0
          %709 = vst [vmem:[#allocation4 + $0x20] sm:$0xff] 0.0
          %710 = vst.msk [vmem:[#allocation4 + $0x28] sm:$0xff] %vm705, 0.0
          %711 = vst [vmem:[#allocation4 + $0x30] sm:$0xff] 0.0
          %712 = vst.msk [vmem:[#allocation4 + $0x38] sm:$0xff] %vm705, 0.0
          %v713 = vld [vmem:[%s3] sm:$0xf]
          %v714 = vld [vmem:[%s3 + $0x4] sm:$0xf]
          %v715 = vld [vmem:[%s3 + $0x8] sm:$0xf]
          %v716 = vld [vmem:[%s3 + $0xc] sm:$0xf]
          %v717 = vld [vmem:[%s648] sm:$0xf]
          %v718 = vld [vmem:[%s4] sm:$0xff]
          %v719 = vld [vmem:[%s4 + $0x8] sm:$0xff]
          %v720 = vld [vmem:[%s4 + $0x10] sm:$0xff]
          %v721 = vld [vmem:[%s4 + $0x18] sm:$0xff]
          %723 = vset.pattern.permute.xlu0 0
          %724 = vperm.xlu0 %723, %v718
          %v725 = vpop.permute.xlu0 %724
          %728 = vset.pattern.permute.xlu0 0
          %729 = vperm.xlu0 %728, %v719
          %v730 = vpop.permute.xlu0 %729
          %733 = vset.pattern.permute.xlu0 0
          %734 = vperm.xlu0 %733, %v720
          %v735 = vpop.permute.xlu0 %734
          %738 = vset.pattern.permute.xlu0 0
          %739 = vperm.xlu0 %738, %v721
          %v740 = vpop.permute.xlu0 %739
          %v746 = vunpack.c.l.b16 %v713
          %v747 = vunpack.c.l.b16 %v714
          %v748 = vunpack.c.l.b16 %v715
          %v749 = vunpack.c.l.b16 %v716
          %v750 = vpack.c.b16 %v747, %v746
          %v751 = vpack.c.b16 %v749, %v748
          %v754 = vunpack.c.l.s4 1983009808
          %v755 = vunpack.c.0.s8 %v754
          %v756 = vlaneseq
          %v757 = vshrl.u32 %v756, 7
          %v758 = vsub.s32 %v755, %v757
          %v759 = vrot.slane %v717, %v758
          %v760 = vcombine.high %v759, %v759
          %vm761 = vcmask 31744
          %v763 = vsel %vm761, %v750, 0
          %v766 = vsel %vm761, %v751, 0
          %vm768 = vcmask 1041408
          %v770 = vsel %vm768, %v759, 0
          %v773 = vsel %vm768, %v760, 0
          %775 = vmatprep.subr.bf16.mxu0 %v773
          %776 = vmatpush1.bf16.msra.mxu0 %v770
          %777 = vmatprep.subr.bf16.mxu0 0
          %778 = vmatpush1.bf16.msra.mxu0 0
          %779 = vmatprep.subr.bf16.mxu0 0
          %780 = vmatpush1.bf16.msra.mxu0 0
          %781 = vmatprep.subr.bf16.mxu0 0
          %782 = vmatpush1.bf16.msra.mxu0 0
          %783 = vmatprep.subr.bf16.mxu0 0
          %784 = vmatpush1.bf16.msra.mxu0 0
          %785 = vmatprep.subr.bf16.mxu0 0
          %786 = vmatpush1.bf16.msra.mxu0 0
          %787 = vmatprep.subr.bf16.mxu0 0
          %788 = vmatpush1.bf16.msra.mxu0 0
          %789 = vmatprep.subr.bf16.mxu0 0
          %790 = vmatpush1.bf16.msra.mxu0 0
          %791 = vmatprep.subr.bf16.mxu0 0
          %792 = vmatpush1.bf16.msra.mxu0 0
          %793 = vmatprep.subr.bf16.mxu0 0
          %794 = vmatpush1.bf16.msra.mxu0 0
          %795 = vmatprep.subr.bf16.mxu0 0
          %796 = vmatpush1.bf16.msra.mxu0 0
          %797 = vmatprep.subr.bf16.mxu0 0
          %798 = vmatpush1.bf16.msra.mxu0 0
          %799 = vmatprep.subr.bf16.mxu0 0
          %800 = vmatpush1.bf16.msra.mxu0 0
          %801 = vmatprep.subr.bf16.mxu0 0
          %802 = vmatpush1.bf16.msra.mxu0 0
          %803 = vmatprep.subr.bf16.mxu0 0
          %804 = vmatpush1.bf16.msra.mxu0 0
          %805 = vmatprep.subr.bf16.mxu0 0
          %806 = vmatpush1.bf16.msra.mxu0 0
          %807 = vmatprep.mubr.bf16.mxu0 0
          %808 = vmatmul.mubr.bf16.gmra.mrb[0].mxu0 %v763
          %v809 = vpop.f32.mrb[0].mxu0
          %v810 = vadd.f32 %v725, %v809
          %v811 = vpop.f32.mrb[0].mxu0
          %v812 = vadd.f32 %v725, %v811
          %v813 = vpop.f32.mrb[0].mxu0
          %v814 = vadd.f32 %v730, %v813
          %v815 = vpop.f32.mrb[0].mxu0
          %v816 = vadd.f32 %v730, %v815
          %817 = vmatprep.mubr.bf16.mxu0 0
          %818 = vmatmul.mubr.bf16.gmra.mrb[0].mxu0 %v766
          %v819 = vpop.f32.mrb[0].mxu0
          %v820 = vadd.f32 %v735, %v819
          %v821 = vpop.f32.mrb[0].mxu0
          %v822 = vadd.f32 %v735, %v821
          %v823 = vpop.f32.mrb[0].mxu0
          %v824 = vadd.f32 %v740, %v823
          %v825 = vpop.f32.mrb[0].mxu0
          %v826 = vadd.f32 %v740, %v825
          %827 = vdwg.mxu0
          %v828 = vmul.f32 %v810, %v693
          %v829 = vmul.f32 %v812, %v694
          %v830 = vmul.f32 %v814, %v693
          %v831 = vmul.f32 %v816, %v694
          %v832 = vmul.f32 %v820, %v693
          %v833 = vmul.f32 %v822, %v694
          %v834 = vmul.f32 %v824, %v693
          %v835 = vmul.f32 %v826, %v694
          %836 = vst [vmem:[#allocation3] sm:$0xff] %v828
          %837 = vst.msk [vmem:[#allocation3 + $0x8] sm:$0xff] %vm705, %v829
          %838 = vst [vmem:[#allocation3 + $0x10] sm:$0xff] %v830
          %839 = vst.msk [vmem:[#allocation3 + $0x18] sm:$0xff] %vm705, %v831
          %840 = vst [vmem:[#allocation3 + $0x20] sm:$0xff] %v832
          %841 = vst.msk [vmem:[#allocation3 + $0x28] sm:$0xff] %vm705, %v833
          %842 = vst [vmem:[#allocation3 + $0x30] sm:$0xff] %v834
          %843 = vst.msk [vmem:[#allocation3 + $0x38] sm:$0xff] %vm705, %v835
          %v844 = vpack.c.bf16 %v830, %v828
          %v845 = vpack.c.bf16 %v831, %v829
          %v846 = vpack.c.bf16 %v834, %v832
          %v847 = vpack.c.bf16 %v835, %v833
          %852 = vrot.lane.b32.xlu0 %v844, 8
          %v853 = vpop.permute.xlu0 %852
          %854 = vrot.lane.b32.xlu0 %v845, 8
          %v855 = vpop.permute.xlu0 %854
          %856 = vrot.lane.b32.xlu0 %v846, 8
          %v857 = vpop.permute.xlu0 %856
          %858 = vrot.lane.b32.xlu0 %v847, 8
          %v859 = vpop.permute.xlu0 %858
          %vm860 = vcmask 64512
          %v861 = vsel %vm860, %v853, %v855
          %v862 = vsel %vm860, %v857, %v859
          %vm867 = vcmask 1047616
          %868 = vst.msk [vmem:[#allocation2] sm:$0xff] %vm867, %v853
          %vm869 = vcmask 293888
          %870 = vst.msk [vmem:[#allocation2 + $0x8] sm:$0xff] %vm869, %v861
          %871 = vst.msk [vmem:[#allocation2 + $0x10] sm:$0xff] %vm867, %v857
          %872 = vst.msk [vmem:[#allocation2 + $0x18] sm:$0xff] %vm869, %v862
        $region72: #{encoder_forward.1} parent=67 // pred_fallthru
          _
        %v873 = vld [vmem:[#allocation2] sm:$0xff]
        %v874 = vld [vmem:[#allocation2 + $0x8] sm:$0xff]
        %v875 = vld [vmem:[#allocation2 + $0x10] sm:$0xff]
        %v876 = vld [vmem:[#allocation2 + $0x18] sm:$0xff]
        // Predicated region
        $region73: #{encoder_forward.1} parent=67 // pred_check
          %p877 = pneg %p695
        $region74: #{encoder_forward.1} parent=67 // pred_check_branch
          %879 = sbr.rel (%p877) target = $region76
        $region75: #{encoder_forward.1} parent=67 // pred_region
          %884 = vrot.lane.b32.xlu0 %v873, 127
          %v885 = vpop.permute.xlu0 %884
          %886 = vrot.lane.b32.xlu0 %v874, 127
          %v887 = vpop.permute.xlu0 %886
          %888 = vrot.lane.b32.xlu0 %v875, 127
          %v889 = vpop.permute.xlu0 %888
          %890 = vrot.lane.b32.xlu0 %v876, 127
          %v891 = vpop.permute.xlu0 %890
          %vm892 = vcmask 1039360
          %v893 = vsel %vm892, %v885, %v887
          %v894 = vsel %vm892, %v889, %v891
          %895 = vrot.lane.b32.xlu0 %v873, 126
          %v896 = vpop.permute.xlu0 %895
          %897 = vrot.lane.b32.xlu0 %v874, 126
          %v898 = vpop.permute.xlu0 %897
          %899 = vrot.lane.b32.xlu0 %v875, 126
          %v900 = vpop.permute.xlu0 %899
          %901 = vrot.lane.b32.xlu0 %v876, 126
          %v902 = vpop.permute.xlu0 %901
          %vm903 = vcmask 1031168
          %v904 = vsel %vm903, %v896, %v898
          %v905 = vsel %vm903, %v900, %v902
          %906 = vrot.lane.b32.xlu0 %v873, 125
          %v907 = vpop.permute.xlu0 %906
          %908 = vrot.lane.b32.xlu0 %v874, 125
          %v909 = vpop.permute.xlu0 %908
          %910 = vrot.lane.b32.xlu0 %v875, 125
          %v911 = vpop.permute.xlu0 %910
          %912 = vrot.lane.b32.xlu0 %v876, 125
          %v913 = vpop.permute.xlu0 %912
          %vm914 = vcmask 1022976
          %v915 = vsel %vm914, %v907, %v909
          %v916 = vsel %vm914, %v911, %v913
          %917 = vrot.lane.b32.xlu0 %v873, 124
          %v918 = vpop.permute.xlu0 %917
          %919 = vrot.lane.b32.xlu0 %v874, 124
          %v920 = vpop.permute.xlu0 %919
          %921 = vrot.lane.b32.xlu0 %v875, 124
          %v922 = vpop.permute.xlu0 %921
          %923 = vrot.lane.b32.xlu0 %v876, 124
          %v924 = vpop.permute.xlu0 %923
          %vm925 = vcmask 1014784
          %v926 = vsel %vm925, %v918, %v920
          %v927 = vsel %vm925, %v922, %v924
          %928 = vrot.lane.b32.xlu0 %v873, 122
          %v929 = vpop.permute.xlu0 %928
          %930 = vrot.lane.b32.xlu0 %v874, 122
          %v931 = vpop.permute.xlu0 %930
          %932 = vrot.lane.b32.xlu0 %v875, 122
          %v933 = vpop.permute.xlu0 %932
          %934 = vrot.lane.b32.xlu0 %v876, 122
          %v935 = vpop.permute.xlu0 %934
          %936 = vrot.lane.b32.xlu0 %v893, 122
          %v937 = vpop.permute.xlu0 %936
          %938 = vrot.lane.b32.xlu0 %v887, 122
          %v939 = vpop.permute.xlu0 %938
          %940 = vrot.lane.b32.xlu0 %v894, 122
          %v941 = vpop.permute.xlu0 %940
          %942 = vrot.lane.b32.xlu0 %v891, 122
          %v943 = vpop.permute.xlu0 %942
          %944 = vrot.lane.b32.xlu0 %v904, 122
          %v945 = vpop.permute.xlu0 %944
          %946 = vrot.lane.b32.xlu0 %v898, 122
          %v947 = vpop.permute.xlu0 %946
          %948 = vrot.lane.b32.xlu0 %v905, 122
          %v949 = vpop.permute.xlu0 %948
          %950 = vrot.lane.b32.xlu0 %v902, 122
          %v951 = vpop.permute.xlu0 %950
          %952 = vrot.lane.b32.xlu0 %v915, 122
          %v953 = vpop.permute.xlu0 %952
          %954 = vrot.lane.b32.xlu0 %v909, 122
          %v955 = vpop.permute.xlu0 %954
          %956 = vrot.lane.b32.xlu0 %v916, 122
          %v957 = vpop.permute.xlu0 %956
          %958 = vrot.lane.b32.xlu0 %v913, 122
          %v959 = vpop.permute.xlu0 %958
          %960 = vrot.lane.b32.xlu0 %v926, 122
          %v961 = vpop.permute.xlu0 %960
          %962 = vrot.lane.b32.xlu0 %v920, 122
          %v963 = vpop.permute.xlu0 %962
          %964 = vrot.lane.b32.xlu0 %v927, 122
          %v965 = vpop.permute.xlu0 %964
          %966 = vrot.lane.b32.xlu0 %v924, 122
          %v967 = vpop.permute.xlu0 %966
          %vm968 = vcmask 998400
          %v969 = vsel %vm968, %v929, %v931
          %v970 = vsel %vm968, %v933, %v935
          %v971 = vsel %vm968, %v937, %v939
          %v972 = vsel %vm968, %v941, %v943
          %v973 = vsel %vm968, %v945, %v947
          %v974 = vsel %vm968, %v949, %v951
          %v975 = vsel %vm968, %v953, %v955
          %v976 = vsel %vm968, %v957, %v959
          %v977 = vsel %vm968, %v961, %v963
          %v978 = vsel %vm968, %v965, %v967
          %999 = vst [vmem:[#allocation5] sm:$0xff] %v969
          %vm1000 = vcmask 228352
          %1001 = vst.msk [vmem:[#allocation5 + $0x8] sm:$0xff] %vm1000, %v931
          %1002 = vst [vmem:[#allocation5 + $0x10] sm:$0xff] %v970
          %1003 = vst.msk [vmem:[#allocation5 + $0x18] sm:$0xff] %vm1000, %v935
          %1004 = vst [vmem:[#allocation5 + $0x20] sm:$0xff] %v971
          %1005 = vst.msk [vmem:[#allocation5 + $0x28] sm:$0xff] %vm1000, %v939
          %1006 = vst [vmem:[#allocation5 + $0x30] sm:$0xff] %v972
          %1007 = vst.msk [vmem:[#allocation5 + $0x38] sm:$0xff] %vm1000, %v943
          %1008 = vst [vmem:[#allocation5 + $0x40] sm:$0xff] %v973
          %1009 = vst.msk [vmem:[#allocation5 + $0x48] sm:$0xff] %vm1000, %v947
          %1010 = vst [vmem:[#allocation5 + $0x50] sm:$0xff] %v974
          %1011 = vst.msk [vmem:[#allocation5 + $0x58] sm:$0xff] %vm1000, %v951
          %1012 = vst [vmem:[#allocation5 + $0x60] sm:$0xff] %v975
          %1013 = vst.msk [vmem:[#allocation5 + $0x68] sm:$0xff] %vm1000, %v955
          %1014 = vst [vmem:[#allocation5 + $0x70] sm:$0xff] %v976
          %1015 = vst.msk [vmem:[#allocation5 + $0x78] sm:$0xff] %vm1000, %v959
          %1016 = vst [vmem:[#allocation5 + $0x80] sm:$0xff] %v977
          %1017 = vst.msk [vmem:[#allocation5 + $0x88] sm:$0xff] %vm1000, %v963
          %1018 = vst [vmem:[#allocation5 + $0x90] sm:$0xff] %v978
          %1019 = vst.msk [vmem:[#allocation5 + $0x98] sm:$0xff] %vm1000, %v967
        $region76: #{encoder_forward.1} parent=67 // pred_fallthru
          _
        %p1020 = scmp.eq.s32.totalorder %s50, 1
        // Predicated region
        $region77: #{encoder_forward.1} parent=67 // pred_check
          %p1021 = pneg %p1020
        $region78: #{encoder_forward.1} parent=67 // pred_check_branch
          %1023 = sbr.rel (%p1021) target = $region80
        $region79: #{encoder_forward.1} parent=67 // pred_region
          %1028 = vrot.lane.b32.xlu0 %v873, 126
          %v1029 = vpop.permute.xlu0 %1028
          %1030 = vrot.lane.b32.xlu0 %v874, 126
          %v1031 = vpop.permute.xlu0 %1030
          %1032 = vrot.lane.b32.xlu0 %v875, 126
          %v1033 = vpop.permute.xlu0 %1032
          %1034 = vrot.lane.b32.xlu0 %v876, 126
          %v1035 = vpop.permute.xlu0 %1034
          %vm1036 = vcmask 1031168
          %v1037 = vsel %vm1036, %v1029, %v1031
          %v1038 = vsel %vm1036, %v1033, %v1035
          %1039 = vrot.lane.b32.xlu0 %v873, 124
          %v1040 = vpop.permute.xlu0 %1039
          %1041 = vrot.lane.b32.xlu0 %v874, 124
          %v1042 = vpop.permute.xlu0 %1041
          %1043 = vrot.lane.b32.xlu0 %v875, 124
          %v1044 = vpop.permute.xlu0 %1043
          %1045 = vrot.lane.b32.xlu0 %v876, 124
          %v1046 = vpop.permute.xlu0 %1045
          %vm1047 = vcmask 1014784
          %v1048 = vsel %vm1047, %v1040, %v1042
          %v1049 = vsel %vm1047, %v1044, %v1046
          %1050 = vrot.lane.b32.xlu0 %v873, 122
          %v1051 = vpop.permute.xlu0 %1050
          %1052 = vrot.lane.b32.xlu0 %v874, 122
          %v1053 = vpop.permute.xlu0 %1052
          %1054 = vrot.lane.b32.xlu0 %v875, 122
          %v1055 = vpop.permute.xlu0 %1054
          %1056 = vrot.lane.b32.xlu0 %v876, 122
          %v1057 = vpop.permute.xlu0 %1056
          %vm1058 = vcmask 998400
          %v1059 = vsel %vm1058, %v1051, %v1053
          %v1060 = vsel %vm1058, %v1055, %v1057
          %1061 = vrot.lane.b32.xlu0 %v873, 120
          %v1062 = vpop.permute.xlu0 %1061
          %1063 = vrot.lane.b32.xlu0 %v874, 120
          %v1064 = vpop.permute.xlu0 %1063
          %1065 = vrot.lane.b32.xlu0 %v875, 120
          %v1066 = vpop.permute.xlu0 %1065
          %1067 = vrot.lane.b32.xlu0 %v876, 120
          %v1068 = vpop.permute.xlu0 %1067
          %vm1069 = vcmask 982016
          %v1070 = vsel %vm1069, %v1062, %v1064
          %v1071 = vsel %vm1069, %v1066, %v1068
          %1072 = vrot.lane.b32.xlu0 %v1037, 124
          %v1073 = vpop.permute.xlu0 %1072
          %1074 = vrot.lane.b32.xlu0 %v1031, 124
          %v1075 = vpop.permute.xlu0 %1074
          %1076 = vrot.lane.b32.xlu0 %v1038, 124
          %v1077 = vpop.permute.xlu0 %1076
          %1078 = vrot.lane.b32.xlu0 %v1035, 124
          %v1079 = vpop.permute.xlu0 %1078
          %1080 = vrot.lane.b32.xlu0 %v1048, 124
          %v1081 = vpop.permute.xlu0 %1080
          %1082 = vrot.lane.b32.xlu0 %v1042, 124
          %v1083 = vpop.permute.xlu0 %1082
          %1084 = vrot.lane.b32.xlu0 %v1049, 124
          %v1085 = vpop.permute.xlu0 %1084
          %1086 = vrot.lane.b32.xlu0 %v1046, 124
          %v1087 = vpop.permute.xlu0 %1086
          %1088 = vrot.lane.b32.xlu0 %v1059, 124
          %v1089 = vpop.permute.xlu0 %1088
          %1090 = vrot.lane.b32.xlu0 %v1053, 124
          %v1091 = vpop.permute.xlu0 %1090
          %1092 = vrot.lane.b32.xlu0 %v1060, 124
          %v1093 = vpop.permute.xlu0 %1092
          %1094 = vrot.lane.b32.xlu0 %v1057, 124
          %v1095 = vpop.permute.xlu0 %1094
          %1096 = vrot.lane.b32.xlu0 %v1070, 124
          %v1097 = vpop.permute.xlu0 %1096
          %1098 = vrot.lane.b32.xlu0 %v1064, 124
          %v1099 = vpop.permute.xlu0 %1098
          %1100 = vrot.lane.b32.xlu0 %v1071, 124
          %v1101 = vpop.permute.xlu0 %1100
          %1102 = vrot.lane.b32.xlu0 %v1068, 124
          %v1103 = vpop.permute.xlu0 %1102
          %v1104 = vsel %vm1047, %v1073, %v1075
          %v1105 = vsel %vm1047, %v1077, %v1079
          %v1106 = vsel %vm1047, %v1081, %v1083
          %v1107 = vsel %vm1047, %v1085, %v1087
          %v1108 = vsel %vm1047, %v1089, %v1091
          %v1109 = vsel %vm1047, %v1093, %v1095
          %v1110 = vsel %vm1047, %v1097, %v1099
          %v1111 = vsel %vm1047, %v1101, %v1103
          %1132 = vst [vmem:[#allocation5] sm:$0xff] %v1048
          %vm1133 = vcmask 228352
          %1134 = vst.msk [vmem:[#allocation5 + $0x8] sm:$0xff] %vm1133, %v1042
          %1135 = vst [vmem:[#allocation5 + $0x10] sm:$0xff] %v1049
          %1136 = vst.msk [vmem:[#allocation5 + $0x18] sm:$0xff] %vm1133, %v1046
          %1137 = vst [vmem:[#allocation5 + $0x20] sm:$0xff] %v1104
          %1138 = vst.msk [vmem:[#allocation5 + $0x28] sm:$0xff] %vm1133, %v1075
          %1139 = vst [vmem:[#allocation5 + $0x30] sm:$0xff] %v1105
          %1140 = vst.msk [vmem:[#allocation5 + $0x38] sm:$0xff] %vm1133, %v1079
          %1141 = vst [vmem:[#allocation5 + $0x40] sm:$0xff] %v1106
          %1142 = vst.msk [vmem:[#allocation5 + $0x48] sm:$0xff] %vm1133, %v1083
          %1143 = vst [vmem:[#allocation5 + $0x50] sm:$0xff] %v1107
          %1144 = vst.msk [vmem:[#allocation5 + $0x58] sm:$0xff] %vm1133, %v1087
          %1145 = vst [vmem:[#allocation5 + $0x60] sm:$0xff] %v1108
          %1146 = vst.msk [vmem:[#allocation5 + $0x68] sm:$0xff] %vm1133, %v1091
          %1147 = vst [vmem:[#allocation5 + $0x70] sm:$0xff] %v1109
          %1148 = vst.msk [vmem:[#allocation5 + $0x78] sm:$0xff] %vm1133, %v1095
          %1149 = vst [vmem:[#allocation5 + $0x80] sm:$0xff] %v1110
          %1150 = vst.msk [vmem:[#allocation5 + $0x88] sm:$0xff] %vm1133, %v1099
          %1151 = vst [vmem:[#allocation5 + $0x90] sm:$0xff] %v1111
          %1152 = vst.msk [vmem:[#allocation5 + $0x98] sm:$0xff] %vm1133, %v1103
        $region80: #{encoder_forward.1} parent=67 // pred_fallthru
          _
        %p1153 = scmp.eq.s32.totalorder %s50, 2
        // Predicated region
        $region81: #{encoder_forward.1} parent=67 // pred_check
          %p1154 = pneg %p1153
        $region82: #{encoder_forward.1} parent=67 // pred_check_branch
          %1156 = sbr.rel (%p1154) target = $region84
        $region83: #{encoder_forward.1} parent=67 // pred_region
          %1161 = vrot.lane.b32.xlu0 %v873, 124
          %v1162 = vpop.permute.xlu0 %1161
          %1163 = vrot.lane.b32.xlu0 %v874, 124
          %v1164 = vpop.permute.xlu0 %1163
          %1165 = vrot.lane.b32.xlu0 %v875, 124
          %v1166 = vpop.permute.xlu0 %1165
          %1167 = vrot.lane.b32.xlu0 %v876, 124
          %v1168 = vpop.permute.xlu0 %1167
          %vm1169 = vcmask 1014784
          %v1170 = vsel %vm1169, %v1162, %v1164
          %v1171 = vsel %vm1169, %v1166, %v1168
          %1176 = vrot.lane.b32.xlu0 %v873, 120
          %v1177 = vpop.permute.xlu0 %1176
          %1178 = vrot.lane.b32.xlu0 %v874, 120
          %v1179 = vpop.permute.xlu0 %1178
          %1180 = vrot.lane.b32.xlu0 %v875, 120
          %v1181 = vpop.permute.xlu0 %1180
          %1182 = vrot.lane.b32.xlu0 %v876, 120
          %v1183 = vpop.permute.xlu0 %1182
          %vm1184 = vcmask 982016
          %v1185 = vsel %vm1184, %v1177, %v1179
          %v1186 = vsel %vm1184, %v1181, %v1183
          %1191 = vrot.lane.b32.xlu0 %v873, 116
          %v1192 = vpop.permute.xlu0 %1191
          %1193 = vrot.lane.b32.xlu0 %v874, 116
          %v1194 = vpop.permute.xlu0 %1193
          %1195 = vrot.lane.b32.xlu0 %v875, 116
          %v1196 = vpop.permute.xlu0 %1195
          %1197 = vrot.lane.b32.xlu0 %v876, 116
          %v1198 = vpop.permute.xlu0 %1197
          %vm1199 = vcmask 949248
          %v1200 = vsel %vm1199, %v1192, %v1194
          %v1201 = vsel %vm1199, %v1196, %v1198
          %1206 = vrot.lane.b32.xlu0 %v873, 112
          %v1207 = vpop.permute.xlu0 %1206
          %1208 = vrot.lane.b32.xlu0 %v874, 112
          %v1209 = vpop.permute.xlu0 %1208
          %1210 = vrot.lane.b32.xlu0 %v875, 112
          %v1211 = vpop.permute.xlu0 %1210
          %1212 = vrot.lane.b32.xlu0 %v876, 112
          %v1213 = vpop.permute.xlu0 %1212
          %vm1214 = vcmask 916480
          %v1215 = vsel %vm1214, %v1207, %v1209
          %v1216 = vsel %vm1214, %v1211, %v1213
          %1221 = vst [vmem:[#allocation5] sm:$0xff] %v873
          %vm1222 = vcmask 228352
          %1223 = vst.msk [vmem:[#allocation5 + $0x8] sm:$0xff] %vm1222, %v874
          %1224 = vst [vmem:[#allocation5 + $0x10] sm:$0xff] %v875
          %1225 = vst.msk [vmem:[#allocation5 + $0x18] sm:$0xff] %vm1222, %v876
          %1226 = vst [vmem:[#allocation5 + $0x20] sm:$0xff] %v1170
          %1227 = vst.msk [vmem:[#allocation5 + $0x28] sm:$0xff] %vm1222, %v1164
          %1228 = vst [vmem:[#allocation5 + $0x30] sm:$0xff] %v1171
          %1229 = vst.msk [vmem:[#allocation5 + $0x38] sm:$0xff] %vm1222, %v1168
          %1230 = vst [vmem:[#allocation5 + $0x40] sm:$0xff] %v1185
          %1231 = vst.msk [vmem:[#allocation5 + $0x48] sm:$0xff] %vm1222, %v1179
          %1232 = vst [vmem:[#allocation5 + $0x50] sm:$0xff] %v1186
          %1233 = vst.msk [vmem:[#allocation5 + $0x58] sm:$0xff] %vm1222, %v1183
          %1234 = vst [vmem:[#allocation5 + $0x60] sm:$0xff] %v1200
          %1235 = vst.msk [vmem:[#allocation5 + $0x68] sm:$0xff] %vm1222, %v1194
          %1236 = vst [vmem:[#allocation5 + $0x70] sm:$0xff] %v1201
          %1237 = vst.msk [vmem:[#allocation5 + $0x78] sm:$0xff] %vm1222, %v1198
          %1238 = vst [vmem:[#allocation5 + $0x80] sm:$0xff] %v1215
          %1239 = vst.msk [vmem:[#allocation5 + $0x88] sm:$0xff] %vm1222, %v1209
          %1240 = vst [vmem:[#allocation5 + $0x90] sm:$0xff] %v1216
          %1241 = vst.msk [vmem:[#allocation5 + $0x98] sm:$0xff] %vm1222, %v1213
        $region84: #{encoder_forward.1} parent=67 // pred_fallthru
          _
        %v1242 = vld [vmem:[%s660] sm:$0xff]
        %v1243 = vld [vmem:[%s660 + $0x8] sm:$0xff]
        %v1244 = vld [vmem:[%s660 + $0x10] sm:$0xff]
        %v1245 = vld [vmem:[%s660 + $0x18] sm:$0xff]
        %v1246 = vld [vmem:[%s660 + $0x20] sm:$0xff]
        %v1247 = vld [vmem:[%s660 + $0x28] sm:$0xff]
        %v1248 = vld [vmem:[%s660 + $0x30] sm:$0xff]
        %v1249 = vld [vmem:[%s660 + $0x38] sm:$0xff]
        %v1250 = vld [vmem:[#allocation5] sm:$0xff]
        %v1251 = vld [vmem:[#allocation5 + $0x8] sm:$0xff]
        %v1252 = vld [vmem:[#allocation5 + $0x10] sm:$0xff]
        %v1253 = vld [vmem:[#allocation5 + $0x18] sm:$0xff]
        %v1254 = vld [vmem:[#allocation5 + $0x20] sm:$0xff]
        %v1255 = vld [vmem:[#allocation5 + $0x28] sm:$0xff]
        %v1256 = vld [vmem:[#allocation5 + $0x30] sm:$0xff]
        %v1257 = vld [vmem:[#allocation5 + $0x38] sm:$0xff]
        %v1258 = vld [vmem:[#allocation5 + $0x40] sm:$0xff]
        %v1259 = vld [vmem:[#allocation5 + $0x48] sm:$0xff]
        %v1260 = vld [vmem:[#allocation5 + $0x50] sm:$0xff]
        %v1261 = vld [vmem:[#allocation5 + $0x58] sm:$0xff]
        %v1262 = vld [vmem:[#allocation5 + $0x60] sm:$0xff]
        %v1263 = vld [vmem:[#allocation5 + $0x68] sm:$0xff]
        %v1264 = vld [vmem:[#allocation5 + $0x70] sm:$0xff]
        %v1265 = vld [vmem:[#allocation5 + $0x78] sm:$0xff]
        %v1266 = vld [vmem:[#allocation5 + $0x80] sm:$0xff]
        %v1267 = vld [vmem:[#allocation5 + $0x88] sm:$0xff]
        %v1268 = vld [vmem:[#allocation5 + $0x90] sm:$0xff]
        %v1269 = vld [vmem:[#allocation5 + $0x98] sm:$0xff]
        %v1270 = vld [vmem:[%s665] sm:$0xff]
        %v1271 = vld [vmem:[%s665 + $0x8] sm:$0xff]
        %v1272 = vld [vmem:[%s665 + $0x10] sm:$0xff]
        %v1273 = vld [vmem:[%s665 + $0x18] sm:$0xff]
        %v1274 = vld [vmem:[%s665 + $0x20] sm:$0xff]
        %v1275 = vld [vmem:[%s665 + $0x28] sm:$0xff]
        %v1276 = vld [vmem:[%s665 + $0x30] sm:$0xff]
        %v1277 = vld [vmem:[%s665 + $0x38] sm:$0xff]
        %1279 = vset.pattern.permute.xlu0 0
        %1280 = vperm.xlu0 %1279, %v1270
        %v1281 = vpop.permute.xlu0 %1280
        %1284 = vset.pattern.permute.xlu0 0
        %1285 = vperm.xlu0 %1284, %v1271
        %v1286 = vpop.permute.xlu0 %1285
        %1289 = vset.pattern.permute.xlu0 0
        %1290 = vperm.xlu0 %1289, %v1272
        %v1291 = vpop.permute.xlu0 %1290
        %1294 = vset.pattern.permute.xlu0 0
        %1295 = vperm.xlu0 %1294, %v1273
        %v1296 = vpop.permute.xlu0 %1295
        %1299 = vset.pattern.permute.xlu0 0
        %1300 = vperm.xlu0 %1299, %v1274
        %v1301 = vpop.permute.xlu0 %1300
        %1304 = vset.pattern.permute.xlu0 0
        %1305 = vperm.xlu0 %1304, %v1275
        %v1306 = vpop.permute.xlu0 %1305
        %1309 = vset.pattern.permute.xlu0 0
        %1310 = vperm.xlu0 %1309, %v1276
        %v1311 = vpop.permute.xlu0 %1310
        %1314 = vset.pattern.permute.xlu0 0
        %1315 = vperm.xlu0 %1314, %v1277
        %v1316 = vpop.permute.xlu0 %1315
        %v1326 = vunpack.c.l.b16 %v1242
        %v1327 = vunpack.c.h.b16 %v1242
        %v1328 = vunpack.c.l.b16 %v1243
        %v1329 = vunpack.c.h.b16 %v1243
        %v1330 = vunpack.c.l.b16 %v1244
        %v1331 = vunpack.c.h.b16 %v1244
        %v1332 = vunpack.c.l.b16 %v1245
        %v1333 = vunpack.c.h.b16 %v1245
        %v1334 = vunpack.c.l.b16 %v1246
        %v1335 = vunpack.c.h.b16 %v1246
        %v1336 = vunpack.c.l.b16 %v1247
        %v1337 = vunpack.c.h.b16 %v1247
        %v1338 = vunpack.c.l.b16 %v1248
        %v1339 = vunpack.c.h.b16 %v1248
        %v1340 = vunpack.c.l.b16 %v1249
        %v1341 = vunpack.c.h.b16 %v1249
        %v1342 = vpack.c.b16 %v1328, %v1326
        %v1343 = vpack.c.b16 %v1329, %v1327
        %v1344 = vpack.c.b16 %v1332, %v1330
        %v1345 = vpack.c.b16 %v1333, %v1331
        %v1346 = vpack.c.b16 %v1336, %v1334
        %v1347 = vpack.c.b16 %v1337, %v1335
        %v1348 = vpack.c.b16 %v1340, %v1338
        %v1349 = vpack.c.b16 %v1341, %v1339
        %vm1354 = vcmask 261120
        %v1356 = vsel %vm1354, %v1343, 0
        %v1359 = vsel %vm1354, %v1345, 0
        %v1362 = vsel %vm1354, %v1347, 0
        %v1365 = vsel %vm1354, %v1349, 0
        %1367 = vmatprep.subr.bf16.mxu0 %v1251
        %1368 = vmatpush1.bf16.msra.mxu0 %v1250
        %1369 = vmatprep.subr.bf16.mxu0 %v1253
        %1370 = vmatpush1.bf16.msra.mxu0 %v1252
        %1371 = vmatprep.subr.bf16.mxu0 %v1255
        %1372 = vmatpush1.bf16.msra.mxu0 %v1254
        %1373 = vmatprep.subr.bf16.mxu0 %v1257
        %1374 = vmatpush1.bf16.msra.mxu0 %v1256
        %1375 = vmatprep.subr.bf16.mxu0 %v1259
        %1376 = vmatpush1.bf16.msra.mxu0 %v1258
        %1377 = vmatprep.subr.bf16.mxu0 %v1261
        %1378 = vmatpush1.bf16.msra.mxu0 %v1260
        %1379 = vmatprep.subr.bf16.mxu0 %v1263
        %1380 = vmatpush1.bf16.msra.mxu0 %v1262
        %1381 = vmatprep.subr.bf16.mxu0 %v1265
        %1382 = vmatpush1.bf16.msra.mxu0 %v1264
        %1383 = vmatprep.subr.bf16.mxu0 %v1267
        %1384 = vmatpush1.bf16.msra.mxu0 %v1266
        %1385 = vmatprep.subr.bf16.mxu0 %v1269
        %1386 = vmatpush1.bf16.msra.mxu0 %v1268
        %1387 = vmatprep.subr.bf16.mxu0 0
        %1388 = vmatpush1.bf16.msra.mxu0 0
        %1389 = vmatprep.subr.bf16.mxu0 0
        %1390 = vmatpush1.bf16.msra.mxu0 0
        %1391 = vmatprep.subr.bf16.mxu0 0
        %1392 = vmatpush1.bf16.msra.mxu0 0
        %1393 = vmatprep.subr.bf16.mxu0 0
        %1394 = vmatpush1.bf16.msra.mxu0 0
        %1395 = vmatprep.subr.bf16.mxu0 0
        %1396 = vmatpush1.bf16.msra.mxu0 0
        %1397 = vmatprep.subr.bf16.mxu0 0
        %1398 = vmatpush1.bf16.msra.mxu0 0
        %1399 = vmatprep.mubr.bf16.mxu0 %v1356
        %1400 = vmatmul.mubr.bf16.gmra.mrb[0].mxu0 %v1342
        %v1401 = vpop.f32.mrb[0].mxu0
        %v1402 = vadd.f32 %v1281, %v1401
        %v1403 = vpop.f32.mrb[0].mxu0
        %v1404 = vadd.f32 %v1281, %v1403
        %v1405 = vpop.f32.mrb[0].mxu0
        %v1406 = vadd.f32 %v1286, %v1405
        %v1407 = vpop.f32.mrb[0].mxu0
        %v1408 = vadd.f32 %v1286, %v1407
        %1409 = vmatprep.mubr.bf16.mxu0 %v1359
        %1410 = vmatmul.mubr.bf16.gmra.mrb[0].mxu0 %v1344
        %v1411 = vpop.f32.mrb[0].mxu0
        %v1412 = vadd.f32 %v1291, %v1411
        %v1413 = vpop.f32.mrb[0].mxu0
        %v1414 = vadd.f32 %v1291, %v1413
        %v1415 = vpop.f32.mrb[0].mxu0
        %v1416 = vadd.f32 %v1296, %v1415
        %v1417 = vpop.f32.mrb[0].mxu0
        %v1418 = vadd.f32 %v1296, %v1417
        %1419 = vmatprep.mubr.bf16.mxu0 %v1362
        %1420 = vmatmul.mubr.bf16.gmra.mrb[0].mxu0 %v1346
        %v1421 = vpop.f32.mrb[0].mxu0
        %v1422 = vadd.f32 %v1301, %v1421
        %v1423 = vpop.f32.mrb[0].mxu0
        %v1424 = vadd.f32 %v1301, %v1423
        %v1425 = vpop.f32.mrb[0].mxu0
        %v1426 = vadd.f32 %v1306, %v1425
        %v1427 = vpop.f32.mrb[0].mxu0
        %v1428 = vadd.f32 %v1306, %v1427
        %1429 = vmatprep.mubr.bf16.mxu0 %v1365
        %1430 = vmatmul.mubr.bf16.gmra.mrb[0].mxu0 %v1348
        %v1431 = vpop.f32.mrb[0].mxu0
        %v1432 = vadd.f32 %v1311, %v1431
        %v1433 = vpop.f32.mrb[0].mxu0
        %v1434 = vadd.f32 %v1311, %v1433
        %v1435 = vpop.f32.mrb[0].mxu0
        %v1436 = vadd.f32 %v1316, %v1435
        %v1437 = vpop.f32.mrb[0].mxu0
        %v1438 = vadd.f32 %v1316, %v1437
        %1439 = vdwg.mxu0
        %v1440 = vtanh.pop %v1402
        %v1441 = vtanh.pop %v1404
        %v1442 = vtanh.pop %v1406
        %v1443 = vtanh.pop %v1408
        %v1444 = vtanh.pop %v1412
        %v1445 = vtanh.pop %v1414
        %v1446 = vtanh.pop %v1416
        %v1447 = vtanh.pop %v1418
        %v1448 = vxor.u32 %v1422, 2147483648
        %v1449 = vxor.u32 %v1424, 2147483648
        %v1450 = vxor.u32 %v1426, 2147483648
        %v1451 = vxor.u32 %v1428, 2147483648
        %v1452 = vxor.u32 %v1432, 2147483648
        %v1453 = vxor.u32 %v1434, 2147483648
        %v1454 = vxor.u32 %v1436, 2147483648
        %v1455 = vxor.u32 %v1438, 2147483648
        %v1456 = vmul.f32 %v1448, 1.442695
        %v1457 = vpow.pop %v1456
        %v1458 = vmul.f32 %v1449, 1.442695
        %v1459 = vpow.pop %v1458
        %v1460 = vmul.f32 %v1450, 1.442695
        %v1461 = vpow.pop %v1460
        %v1462 = vmul.f32 %v1451, 1.442695
        %v1463 = vpow.pop %v1462
        %v1464 = vmul.f32 %v1452, 1.442695
        %v1465 = vpow.pop %v1464
        %v1466 = vmul.f32 %v1453, 1.442695
        %v1467 = vpow.pop %v1466
        %v1468 = vmul.f32 %v1454, 1.442695
        %v1469 = vpow.pop %v1468
        %v1470 = vmul.f32 %v1455, 1.442695
        %v1471 = vpow.pop %v1470
        %v1472 = vadd.f32 %v1457, 1.0
        %v1473 = vadd.f32 %v1459, 1.0
        %v1474 = vadd.f32 %v1461, 1.0
        %v1475 = vadd.f32 %v1463, 1.0
        %v1476 = vadd.f32 %v1465, 1.0
        %v1477 = vadd.f32 %v1467, 1.0
        %v1478 = vadd.f32 %v1469, 1.0
        %v1479 = vadd.f32 %v1471, 1.0
        %v1480 = vrcp.pop %v1472
        %v1481 = vmul.f32 1.0, %v1480
        %v1482 = vrcp.pop %v1473
        %v1483 = vmul.f32 1.0, %v1482
        %v1484 = vrcp.pop %v1474
        %v1485 = vmul.f32 1.0, %v1484
        %v1486 = vrcp.pop %v1475
        %v1487 = vmul.f32 1.0, %v1486
        %v1488 = vrcp.pop %v1476
        %v1489 = vmul.f32 1.0, %v1488
        %v1490 = vrcp.pop %v1477
        %v1491 = vmul.f32 1.0, %v1490
        %v1492 = vrcp.pop %v1478
        %v1493 = vmul.f32 1.0, %v1492
        %v1494 = vrcp.pop %v1479
        %v1495 = vmul.f32 1.0, %v1494
        %v1496 = vmul.f32 %v1440, %v1481
        %v1497 = vmul.f32 %v1441, %v1483
        %v1498 = vmul.f32 %v1442, %v1485
        %v1499 = vmul.f32 %v1443, %v1487
        %v1500 = vmul.f32 %v1444, %v1489
        %v1501 = vmul.f32 %v1445, %v1491
        %v1502 = vmul.f32 %v1446, %v1493
        %v1503 = vmul.f32 %v1447, %v1495
        %v1504 = vld [vmem:[%s670] sm:$0xf]
        %v1505 = vld [vmem:[%s670 + $0x4] sm:$0xf]
        %v1506 = vld [vmem:[%s670 + $0x8] sm:$0xf]
        %v1507 = vld [vmem:[%s670 + $0xc] sm:$0xf]
        %v1508 = vld [vmem:[%s670 + $0x10] sm:$0xf]
        %v1509 = vld [vmem:[%s670 + $0x14] sm:$0xf]
        %v1510 = vld [vmem:[%s670 + $0x18] sm:$0xf]
        %v1511 = vld [vmem:[%s670 + $0x1c] sm:$0xf]
        %v1512 = vpack.c.bf16 %v1498, %v1496
        %v1513 = vpack.c.bf16 %v1499, %v1497
        %v1514 = vpack.c.bf16 %v1502, %v1500
        %v1515 = vpack.c.bf16 %v1503, %v1501
        %v1516 = vld [vmem:[%s675] sm:$0xff]
        %v1517 = vld [vmem:[%s675 + $0x8] sm:$0xff]
        %v1518 = vld [vmem:[%s675 + $0x10] sm:$0xff]
        %v1519 = vld [vmem:[%s675 + $0x18] sm:$0xff]
        %v1520 = vld [vmem:[%s675 + $0x20] sm:$0xff]
        %v1521 = vld [vmem:[%s675 + $0x28] sm:$0xff]
        %v1522 = vld [vmem:[%s675 + $0x30] sm:$0xff]
        %v1523 = vld [vmem:[%s675 + $0x38] sm:$0xff]
        %1525 = vset.pattern.permute.xlu0 0
        %1526 = vperm.xlu0 %1525, %v1516
        %v1527 = vpop.permute.xlu0 %1526
        %1530 = vset.pattern.permute.xlu0 0
        %1531 = vperm.xlu0 %1530, %v1517
        %v1532 = vpop.permute.xlu0 %1531
        %1535 = vset.pattern.permute.xlu0 0
        %1536 = vperm.xlu0 %1535, %v1518
        %v1537 = vpop.permute.xlu0 %1536
        %1540 = vset.pattern.permute.xlu0 0
        %1541 = vperm.xlu0 %1540, %v1519
        %v1542 = vpop.permute.xlu0 %1541
        %1545 = vset.pattern.permute.xlu0 0
        %1546 = vperm.xlu0 %1545, %v1520
        %v1547 = vpop.permute.xlu0 %1546
        %1550 = vset.pattern.permute.xlu0 0
        %1551 = vperm.xlu0 %1550, %v1521
        %v1552 = vpop.permute.xlu0 %1551
        %1555 = vset.pattern.permute.xlu0 0
        %1556 = vperm.xlu0 %1555, %v1522
        %v1557 = vpop.permute.xlu0 %1556
        %1560 = vset.pattern.permute.xlu0 0
        %1561 = vperm.xlu0 %1560, %v1523
        %v1562 = vpop.permute.xlu0 %1561
        %v1572 = vunpack.c.l.b16 %v1504
        %v1573 = vunpack.c.l.b16 %v1505
        %v1574 = vunpack.c.l.b16 %v1506
        %v1575 = vunpack.c.l.b16 %v1507
        %v1576 = vunpack.c.l.b16 %v1508
        %v1577 = vunpack.c.l.b16 %v1509
        %v1578 = vunpack.c.l.b16 %v1510
        %v1579 = vunpack.c.l.b16 %v1511
        %v1580 = vpack.c.b16 %v1573, %v1572
        %v1581 = vpack.c.b16 %v1575, %v1574
        %v1582 = vpack.c.b16 %v1577, %v1576
        %v1583 = vpack.c.b16 %v1579, %v1578
        %v1585 = vsel %vm1354, %v1580, 0
        %v1588 = vsel %vm1354, %v1581, 0
        %v1591 = vsel %vm1354, %v1582, 0
        %v1594 = vsel %vm1354, %v1583, 0
        %1596 = vmatprep.subr.bf16.mxu0 %v1513
        %1597 = vmatpush1.bf16.msra.mxu0 %v1512
        %1598 = vmatprep.subr.bf16.mxu0 %v1515
        %1599 = vmatpush1.bf16.msra.mxu0 %v1514
        %1600 = vmatprep.subr.bf16.mxu0 0
        %1601 = vmatpush1.bf16.msra.mxu0 0
        %1602 = vmatprep.subr.bf16.mxu0 0
        %1603 = vmatpush1.bf16.msra.mxu0 0
        %1604 = vmatprep.subr.bf16.mxu0 0
        %1605 = vmatpush1.bf16.msra.mxu0 0
        %1606 = vmatprep.subr.bf16.mxu0 0
        %1607 = vmatpush1.bf16.msra.mxu0 0
        %1608 = vmatprep.subr.bf16.mxu0 0
        %1609 = vmatpush1.bf16.msra.mxu0 0
        %1610 = vmatprep.subr.bf16.mxu0 0
        %1611 = vmatpush1.bf16.msra.mxu0 0
        %1612 = vmatprep.subr.bf16.mxu0 0
        %1613 = vmatpush1.bf16.msra.mxu0 0
        %1614 = vmatprep.subr.bf16.mxu0 0
        %1615 = vmatpush1.bf16.msra.mxu0 0
        %1616 = vmatprep.subr.bf16.mxu0 0
        %1617 = vmatpush1.bf16.msra.mxu0 0
        %1618 = vmatprep.subr.bf16.mxu0 0
        %1619 = vmatpush1.bf16.msra.mxu0 0
        %1620 = vmatprep.subr.bf16.mxu0 0
        %1621 = vmatpush1.bf16.msra.mxu0 0
        %1622 = vmatprep.subr.bf16.mxu0 0
        %1623 = vmatpush1.bf16.msra.mxu0 0
        %1624 = vmatprep.subr.bf16.mxu0 0
        %1625 = vmatpush1.bf16.msra.mxu0 0
        %1626 = vmatprep.subr.bf16.mxu0 0
        %1627 = vmatpush1.bf16.msra.mxu0 0
        %1628 = vmatprep.mubr.bf16.mxu0 0
        %1629 = vmatmul.mubr.bf16.gmra.mrb[0].mxu0 %v1585
        %v1630 = vpop.f32.mrb[0].mxu0
        %v1631 = vadd.f32 %v1527, %v1630
        %v1632 = vpop.f32.mrb[0].mxu0
        %v1633 = vadd.f32 %v1527, %v1632
        %v1634 = vpop.f32.mrb[0].mxu0
        %v1635 = vadd.f32 %v1532, %v1634
        %v1636 = vpop.f32.mrb[0].mxu0
        %v1637 = vadd.f32 %v1532, %v1636
        %1638 = vmatprep.mubr.bf16.mxu0 0
        %1639 = vmatmul.mubr.bf16.gmra.mrb[0].mxu0 %v1588
        %v1640 = vpop.f32.mrb[0].mxu0
        %v1641 = vadd.f32 %v1537, %v1640
        %v1642 = vpop.f32.mrb[0].mxu0
        %v1643 = vadd.f32 %v1537, %v1642
        %v1644 = vpop.f32.mrb[0].mxu0
        %v1645 = vadd.f32 %v1542, %v1644
        %v1646 = vpop.f32.mrb[0].mxu0
        %v1647 = vadd.f32 %v1542, %v1646
        %1648 = vmatprep.mubr.bf16.mxu0 0
        %1649 = vmatmul.mubr.bf16.gmra.mrb[0].mxu0 %v1591
        %v1650 = vpop.f32.mrb[0].mxu0
        %v1651 = vadd.f32 %v1547, %v1650
        %v1652 = vpop.f32.mrb[0].mxu0
        %v1653 = vadd.f32 %v1547, %v1652
        %v1654 = vpop.f32.mrb[0].mxu0
        %v1655 = vadd.f32 %v1552, %v1654
        %v1656 = vpop.f32.mrb[0].mxu0
        %v1657 = vadd.f32 %v1552, %v1656
        %1658 = vmatprep.mubr.bf16.mxu0 0
        %1659 = vmatmul.mubr.bf16.gmra.mrb[0].mxu0 %v1594
        %v1660 = vpop.f32.mrb[0].mxu0
        %v1661 = vadd.f32 %v1557, %v1660
        %v1662 = vpop.f32.mrb[0].mxu0
        %v1663 = vadd.f32 %v1557, %v1662
        %v1664 = vpop.f32.mrb[0].mxu0
        %v1665 = vadd.f32 %v1562, %v1664
        %v1666 = vpop.f32.mrb[0].mxu0
        %v1667 = vadd.f32 %v1562, %v1666
        %1668 = vdwg.mxu0
        %p1669 = scmp.lt.s32.totalorder %s50, 2
        // Predicated region
        $region85: #{encoder_forward.1} parent=67 // pred_check
          %p1670 = pneg %p1669
        $region86: #{encoder_forward.1} parent=67 // pred_check_branch
          %1672 = sbr.rel (%p1670) target = $region88
        $region87: #{encoder_forward.1} parent=67 // pred_region
          %v1673 = vld [vmem:[#allocation3] sm:$0xff]
          %v1674 = vld [vmem:[#allocation3 + $0x8] sm:$0xff]
          %v1675 = vld [vmem:[#allocation3 + $0x10] sm:$0xff]
          %v1676 = vld [vmem:[#allocation3 + $0x18] sm:$0xff]
          %v1677 = vld [vmem:[#allocation3 + $0x20] sm:$0xff]
          %v1678 = vld [vmem:[#allocation3 + $0x28] sm:$0xff]
          %v1679 = vld [vmem:[#allocation3 + $0x30] sm:$0xff]
          %v1680 = vld [vmem:[#allocation3 + $0x38] sm:$0xff]
          %v1681 = vadd.f32 %v1673, %v1631
          %v1682 = vadd.f32 %v1674, %v1633
          %v1683 = vadd.f32 %v1675, %v1635
          %v1684 = vadd.f32 %v1676, %v1637
          %v1685 = vadd.f32 %v1677, %v1641
          %v1686 = vadd.f32 %v1678, %v1643
          %v1687 = vadd.f32 %v1679, %v1645
          %v1688 = vadd.f32 %v1680, %v1647
          %v1689 = vmul.f32 %v1681, %v693
          %v1690 = vmul.f32 %v1682, %v694
          %v1691 = vmul.f32 %v1683, %v693
          %v1692 = vmul.f32 %v1684, %v694
          %v1693 = vmul.f32 %v1685, %v693
          %v1694 = vmul.f32 %v1686, %v694
          %v1695 = vmul.f32 %v1687, %v693
          %v1696 = vmul.f32 %v1688, %v694
          %1697 = vst [vmem:[#allocation3] sm:$0xff] %v1689
          %vm1698 = vcmask 228352
          %1699 = vst.msk [vmem:[#allocation3 + $0x8] sm:$0xff] %vm1698, %v1690
          %1700 = vst [vmem:[#allocation3 + $0x10] sm:$0xff] %v1691
          %1701 = vst.msk [vmem:[#allocation3 + $0x18] sm:$0xff] %vm1698, %v1692
          %1702 = vst [vmem:[#allocation3 + $0x20] sm:$0xff] %v1693
          %1703 = vst.msk [vmem:[#allocation3 + $0x28] sm:$0xff] %vm1698, %v1694
          %1704 = vst [vmem:[#allocation3 + $0x30] sm:$0xff] %v1695
          %1705 = vst.msk [vmem:[#allocation3 + $0x38] sm:$0xff] %vm1698, %v1696
          %v1706 = vpack.c.bf16 %v1691, %v1689
          %v1707 = vpack.c.bf16 %v1692, %v1690
          %v1708 = vpack.c.bf16 %v1695, %v1693
          %v1709 = vpack.c.bf16 %v1696, %v1694
          %1714 = vrot.lane.b32.xlu0 %v1706, 8
          %v1715 = vpop.permute.xlu0 %1714
          %1716 = vrot.lane.b32.xlu0 %v1707, 8
          %v1717 = vpop.permute.xlu0 %1716
          %1718 = vrot.lane.b32.xlu0 %v1708, 8
          %v1719 = vpop.permute.xlu0 %1718
          %1720 = vrot.lane.b32.xlu0 %v1709, 8
          %v1721 = vpop.permute.xlu0 %1720
          %vm1722 = vcmask 64512
          %v1723 = vsel %vm1722, %v1715, %v1717
          %v1724 = vsel %vm1722, %v1719, %v1721
          %vm1729 = vcmask 1047616
          %1730 = vst.msk [vmem:[#allocation2] sm:$0xff] %vm1729, %v1715
          %vm1731 = vcmask 293888
          %1732 = vst.msk [vmem:[#allocation2 + $0x8] sm:$0xff] %vm1731, %v1723
          %1733 = vst.msk [vmem:[#allocation2 + $0x10] sm:$0xff] %vm1729, %v1719
          %1734 = vst.msk [vmem:[#allocation2 + $0x18] sm:$0xff] %vm1731, %v1724
          %v1735 = vld [vmem:[#allocation4] sm:$0xff]
          %v1736 = vld [vmem:[#allocation4 + $0x8] sm:$0xff]
          %v1737 = vld [vmem:[#allocation4 + $0x10] sm:$0xff]
          %v1738 = vld [vmem:[#allocation4 + $0x18] sm:$0xff]
          %v1739 = vld [vmem:[#allocation4 + $0x20] sm:$0xff]
          %v1740 = vld [vmem:[#allocation4 + $0x28] sm:$0xff]
          %v1741 = vld [vmem:[#allocation4 + $0x30] sm:$0xff]
          %v1742 = vld [vmem:[#allocation4 + $0x38] sm:$0xff]
          %v1743 = vadd.f32 %v1735, %v1651
          %v1744 = vadd.f32 %v1736, %v1653
          %v1745 = vadd.f32 %v1737, %v1655
          %v1746 = vadd.f32 %v1738, %v1657
          %v1747 = vadd.f32 %v1739, %v1661
          %v1748 = vadd.f32 %v1740, %v1663
          %v1749 = vadd.f32 %v1741, %v1665
          %v1750 = vadd.f32 %v1742, %v1667
          %1751 = vst [vmem:[#allocation4] sm:$0xff] %v1743
          %1752 = vst.msk [vmem:[#allocation4 + $0x8] sm:$0xff] %vm1698, %v1744
          %1753 = vst [vmem:[#allocation4 + $0x10] sm:$0xff] %v1745
          %1754 = vst.msk [vmem:[#allocation4 + $0x18] sm:$0xff] %vm1698, %v1746
          %1755 = vst [vmem:[#allocation4 + $0x20] sm:$0xff] %v1747
          %1756 = vst.msk [vmem:[#allocation4 + $0x28] sm:$0xff] %vm1698, %v1748
          %1757 = vst [vmem:[#allocation4 + $0x30] sm:$0xff] %v1749
          %1758 = vst.msk [vmem:[#allocation4 + $0x38] sm:$0xff] %vm1698, %v1750
        $region88: #{encoder_forward.1} parent=67 // pred_fallthru
          _
        // Predicated region
        $region89: #{encoder_forward.1} parent=67 // pred_check
          %p1759 = pneg %p1153
        $region90: #{encoder_forward.1} parent=67 // pred_check_branch
          %1761 = sbr.rel (%p1759) target = $region92
        $region91: #{encoder_forward.1} parent=67 // pred_region
          %v1762 = vld [vmem:[#allocation4] sm:$0xff]
          %v1763 = vld [vmem:[#allocation4 + $0x8] sm:$0xff]
          %v1764 = vld [vmem:[#allocation4 + $0x10] sm:$0xff]
          %v1765 = vld [vmem:[#allocation4 + $0x18] sm:$0xff]
          %v1766 = vld [vmem:[#allocation4 + $0x20] sm:$0xff]
          %v1767 = vld [vmem:[#allocation4 + $0x28] sm:$0xff]
          %v1768 = vld [vmem:[#allocation4 + $0x30] sm:$0xff]
          %v1769 = vld [vmem:[#allocation4 + $0x38] sm:$0xff]
          %v1770 = vadd.f32 %v1762, %v1631
          %v1771 = vadd.f32 %v1763, %v1633
          %v1772 = vadd.f32 %v1764, %v1635
          %v1773 = vadd.f32 %v1765, %v1637
          %v1774 = vadd.f32 %v1766, %v1641
          %v1775 = vadd.f32 %v1767, %v1643
          %v1776 = vadd.f32 %v1768, %v1645
          %v1777 = vadd.f32 %v1769, %v1647
          %v1778 = vmul.f32 %v1770, %v693
          %v1779 = vmul.f32 %v1771, %v694
          %v1780 = vmul.f32 %v1772, %v693
          %v1781 = vmul.f32 %v1773, %v694
          %v1782 = vmul.f32 %v1774, %v693
          %v1783 = vmul.f32 %v1775, %v694
          %v1784 = vmul.f32 %v1776, %v693
          %v1785 = vmul.f32 %v1777, %v694
          %v1786 = vpack.c.bf16 %v1780, %v1778
          %v1787 = vpack.c.bf16 %v1781, %v1779
          %v1788 = vpack.c.bf16 %v1784, %v1782
          %v1789 = vpack.c.bf16 %v1785, %v1783
          %v1790 = vld [vmem:[%s9] sm:$0x3]
          %v1791 = vld [vmem:[%s10] sm:$0xf]
          %1793 = vset.pattern.permute.xlu0 0
          %1794 = vperm.xlu0 %1793, %v1791
          %v1795 = vpop.permute.xlu0 %1794
          %1801 = vrot.lane.b32.xlu0 %v1786, 114
          %v1802 = vpop.permute.xlu0 %1801
          %1803 = vrot.lane.b32.xlu0 %v1787, 114
          %v1804 = vpop.permute.xlu0 %1803
          %1805 = vrot.lane.b32.xlu0 %v1788, 114
          %v1806 = vpop.permute.xlu0 %1805
          %1807 = vrot.lane.b32.xlu0 %v1789, 114
          %v1808 = vpop.permute.xlu0 %1807
          %vm1809 = vcmask 932864
          %v1810 = vsel %vm1809, %v1802, %v1804
          %v1811 = vsel %vm1809, %v1806, %v1808
          %v1815 = vsel %vm1354, %v1790, 0
          %1817 = vmatprep.subr.bf16.mxu0 0
          %1818 = vmatpush1.bf16.msra.mxu0 %v1810
          %1819 = vmatprep.subr.bf16.mxu0 0
          %1820 = vmatpush1.bf16.msra.mxu0 %v1811
          %1821 = vmatprep.subr.bf16.mxu0 0
          %1822 = vmatpush1.bf16.msra.mxu0 0
          %1823 = vmatprep.subr.bf16.mxu0 0
          %1824 = vmatpush1.bf16.msra.mxu0 0
          %1825 = vmatprep.subr.bf16.mxu0 0
          %1826 = vmatpush1.bf16.msra.mxu0 0
          %1827 = vmatprep.subr.bf16.mxu0 0
          %1828 = vmatpush1.bf16.msra.mxu0 0
          %1829 = vmatprep.subr.bf16.mxu0 0
          %1830 = vmatpush1.bf16.msra.mxu0 0
          %1831 = vmatprep.subr.bf16.mxu0 0
          %1832 = vmatpush1.bf16.msra.mxu0 0
          %1833 = vmatprep.subr.bf16.mxu0 0
          %1834 = vmatpush1.bf16.msra.mxu0 0
          %1835 = vmatprep.subr.bf16.mxu0 0
          %1836 = vmatpush1.bf16.msra.mxu0 0
          %1837 = vmatprep.subr.bf16.mxu0 0
          %1838 = vmatpush1.bf16.msra.mxu0 0
          %1839 = vmatprep.subr.bf16.mxu0 0
          %1840 = vmatpush1.bf16.msra.mxu0 0
          %1841 = vmatprep.subr.bf16.mxu0 0
          %1842 = vmatpush1.bf16.msra.mxu0 0
          %1843 = vmatprep.subr.bf16.mxu0 0
          %1844 = vmatpush1.bf16.msra.mxu0 0
          %1845 = vmatprep.subr.bf16.mxu0 0
          %1846 = vmatpush1.bf16.msra.mxu0 0
          %1847 = vmatprep.subr.bf16.mxu0 0
          %1848 = vmatpush1.bf16.msra.mxu0 0
          %1849 = vmatprep.mubr.bf16.mxu0 0
          %1850 = vmatmul.mubr.bf16.gmra.mrb[0].mxu0 %v1815
          %v1851 = vpop.f32.mrb[0].mxu0
          %v1852 = vadd.f32 %v1795, %v1851
          %v1853 = vpop.f32.mrb[0].mxu0
          %v1854 = vpop.f32.mrb[0].mxu0
          %v1855 = vpop.f32.mrb[0].mxu0
          %1856 = vdwg.mxu0
          %v1857 = vld [vmem:[%s11] sm:$0x3]
          %v1858 = vld [vmem:[%s12] sm:$0xf]
          %1860 = vset.pattern.permute.xlu0 0
          %1861 = vperm.xlu0 %1860, %v1858
          %v1862 = vpop.permute.xlu0 %1861
          %v1865 = vsel %vm1354, %v1857, 0
          %1867 = vmatprep.subr.bf16.mxu0 0
          %1868 = vmatpush1.bf16.msra.mxu0 %v1810
          %1869 = vmatprep.subr.bf16.mxu0 0
          %1870 = vmatpush1.bf16.msra.mxu0 %v1811
          %1871 = vmatprep.subr.bf16.mxu0 0
          %1872 = vmatpush1.bf16.msra.mxu0 0
          %1873 = vmatprep.subr.bf16.mxu0 0
          %1874 = vmatpush1.bf16.msra.mxu0 0
          %1875 = vmatprep.subr.bf16.mxu0 0
          %1876 = vmatpush1.bf16.msra.mxu0 0
          %1877 = vmatprep.subr.bf16.mxu0 0
          %1878 = vmatpush1.bf16.msra.mxu0 0
          %1879 = vmatprep.subr.bf16.mxu0 0
          %1880 = vmatpush1.bf16.msra.mxu0 0
          %1881 = vmatprep.subr.bf16.mxu0 0
          %1882 = vmatpush1.bf16.msra.mxu0 0
          %1883 = vmatprep.subr.bf16.mxu0 0
          %1884 = vmatpush1.bf16.msra.mxu0 0
          %1885 = vmatprep.subr.bf16.mxu0 0
          %1886 = vmatpush1.bf16.msra.mxu0 0
          %1887 = vmatprep.subr.bf16.mxu0 0
          %1888 = vmatpush1.bf16.msra.mxu0 0
          %1889 = vmatprep.subr.bf16.mxu0 0
          %1890 = vmatpush1.bf16.msra.mxu0 0
          %1891 = vmatprep.subr.bf16.mxu0 0
          %1892 = vmatpush1.bf16.msra.mxu0 0
          %1893 = vmatprep.subr.bf16.mxu0 0
          %1894 = vmatpush1.bf16.msra.mxu0 0
          %1895 = vmatprep.subr.bf16.mxu0 0
          %1896 = vmatpush1.bf16.msra.mxu0 0
          %1897 = vmatprep.subr.bf16.mxu0 0
          %1898 = vmatpush1.bf16.msra.mxu0 0
          %1899 = vmatprep.mubr.bf16.mxu0 0
          %1900 = vmatmul.mubr.bf16.gmra.mrb[0].mxu0 %v1865
          %v1901 = vpop.f32.mrb[0].mxu0
          %v1902 = vadd.f32 %v1862, %v1901
          %v1903 = vpop.f32.mrb[0].mxu0
          %v1904 = vpop.f32.mrb[0].mxu0
          %v1905 = vpop.f32.mrb[0].mxu0
          %1906 = vdwg.mxu0
          %1909 = vrot.lane.b32.xlu0 %v693, 114
          %v1910 = vpop.permute.xlu0 %1909
          %1911 = vrot.lane.b32.xlu0 %v694, 114
          %v1912 = vpop.permute.xlu0 %1911
          %vm1913 = vcmask 932864
          %v1914 = vsel %vm1913, %v1910, %v1912
          %v1916 = vmul.f32 %v1852, %v1914
          %v1917 = vmul.f32 %v1902, %v1914
          %v1918 = vld [vmem:[%s655] sm:$0xf]
          %v1919 = vmul.f32 %v1917, 1.442695
          %v1920 = vpow.pop %v1919
          %v1921 = vmul.f32 %v1918, %v1920
          %v1922 = vadd.f32 %v1916, %v1921
          %v1923 = vmul.f32 %v1922, %v1914
          %1924 = vst [vmem:[%s619] sm:$0xf] %v1923
          %1925 = vst [vmem:[%s626] sm:$0xf] %v1916
          %1926 = vst [vmem:[%s633] sm:$0xf] %v1917
          %1927 = vst [vmem:[%s639] sm:$0x1] %v1914
        $region92: #{encoder_forward.1} parent=67 // pred_fallthru
          _
        %s1928 = sand.u32 %s358, 1
        %s1929 = scalar_lea.sflag [#allocation9], %s1928
        %s1930 = sand.u32 %s358, 1
        %s1931 = smul.addr %s1930, 4
        %s1932 = scalar_lea.vmem [#allocation8], %s1931
        %s1933 = sand.u32 %s43, 1
        %s1934 = scalar_lea.sflag [#allocation11], %s1933
        %s1935 = sand.u32 %s386, 1
        %s1936 = smul.addr %s1935, 4
        %s1937 = scalar_lea.vmem [#allocation10], %s1936
        %s1938 = sand.u32 %s43, 1
        %s1939 = scalar_lea.sflag [#allocation11], %s1938
        %s1940 = sand.u32 %s414, 1
        %s1941 = smul.addr %s1940, 4
        %s1942 = scalar_lea.vmem [#allocation12], %s1941
        %s1943 = sand.u32 %s442, 1
        %s1944 = scalar_lea.sflag [#allocation14], %s1943
        %s1945 = sand.u32 %s442, 1
        %s1946 = scalar_lea.vmem [#allocation13], %s1945
        // Predicated region
        $region93: #{encoder_forward.1} parent=67 // pred_check
          %p1947 = pneg %p368
        $region94: #{encoder_forward.1} parent=67 // pred_check_branch
          %1949 = sbr.rel (%p1947) target = $region96
        $region95: #{encoder_forward.1} parent=67 // pred_region
          %s1951 = ssub.s32 64, 64
          %1952 = vsyncadd %s1929, %s1951
          %s1953 = sadd.s32 %s49, %s48
          %s1954 = smul.addr %s1953, 64
          %s1955 = scalar_lea.hbm %s13, %s1954
          %s1957 = sshll.u32 %s1932, 4
          %s1958 = int_to_ptr.vmem [resolvable:$true] %s1957
          %1960 = dma.vmem_to_hbm [thread:$0]  %s1958, 64, %s1955, %s1929
        $region96: #{encoder_forward.1} parent=67 // pred_fallthru
          _
        // Predicated region
        $region97: #{encoder_forward.1} parent=67 // pred_check
          %p1961 = pneg %p396
        $region98: #{encoder_forward.1} parent=67 // pred_check_branch
          %1963 = sbr.rel (%p1961) target = $region100
        $region99: #{encoder_forward.1} parent=67 // pred_region
          %s1965 = ssub.s32 64, 64
          %1966 = vsyncadd %s1934, %s1965
          %s1967 = sadd.s32 %s49, %s48
          %s1968 = smul.addr %s1967, 64
          %s1969 = scalar_lea.hbm %s14, %s1968
          %s1971 = sshll.u32 %s1937, 4
          %s1972 = int_to_ptr.vmem [resolvable:$true] %s1971
          %1974 = dma.vmem_to_hbm [thread:$0]  %s1972, 64, %s1969, %s1934
        $region100: #{encoder_forward.1} parent=67 // pred_fallthru
          _
        // Predicated region
        $region101: #{encoder_forward.1} parent=67 // pred_check
          %p1975 = pneg %p424
        $region102: #{encoder_forward.1} parent=67 // pred_check_branch
          %1977 = sbr.rel (%p1975) target = $region104
        $region103: #{encoder_forward.1} parent=67 // pred_region
          %s1979 = ssub.s32 64, 64
          %1980 = vsyncadd %s1939, %s1979
          %s1981 = sadd.s32 %s49, %s48
          %s1982 = smul.addr %s1981, 64
          %s1983 = scalar_lea.hbm %s15, %s1982
          %s1985 = sshll.u32 %s1942, 4
          %s1986 = int_to_ptr.vmem [resolvable:$true] %s1985
          %1988 = dma.vmem_to_hbm [thread:$0]  %s1986, 64, %s1983, %s1939
        $region104: #{encoder_forward.1} parent=67 // pred_fallthru
          _
        // Predicated region
        $region105: #{encoder_forward.1} parent=67 // pred_check
          %p1989 = pneg %p452
        $region106: #{encoder_forward.1} parent=67 // pred_check_branch
          %1991 = sbr.rel (%p1989) target = $region108
        $region107: #{encoder_forward.1} parent=67 // pred_region
          %s1993 = ssub.s32 16, 16
          %1994 = vsyncadd %s1944, %s1993
          %s1995 = sadd.s32 %s49, %s48
          %s1996 = smul.addr %s1995, 16
          %s1997 = scalar_lea.hbm %s16, %s1996
          %s1999 = sshll.u32 %s1946, 4
          %s2000 = int_to_ptr.vmem [resolvable:$true] %s1999
          %2002 = dma.vmem_to_hbm [thread:$0]  %s2000, 16, %s1997, %s1944
        $region108: #{encoder_forward.1} parent=67 // pred_fallthru
          _
      $region68: #{encoder_forward.1} parent=5 // pred_fallthru
        _
      %p2003 = scmp.le.s32.totalorder 2, %s38
      // Predicated region
      $region109: #{encoder_forward.1} parent=5 // pred_check
        %p2004 = pneg %p2003
      $region110: #{encoder_forward.1} parent=5 // pred_check_branch
        %2006 = sbr.rel (%p2004) target = $region112
      $region111: #{encoder_forward.1} parent=5 // pred_region
        %s2007 = ssub.s32 %s38, 2
        // Predicated region
        $region113: #{encoder_forward.1} parent=111 // pred_check
          %p2008 = pneg %p374
        $region114: #{encoder_forward.1} parent=111 // pred_check_branch
          %2010 = sbr.rel (%p2008) target = $region116
        $region115: #{encoder_forward.1} parent=111 // pred_region
          %s2011 = sand.u32 %s359, 1
          %s2012 = scalar_lea.sflag [#allocation9], %s2011
          %s2013 = sand.u32 %s359, 1
          %s2014 = smul.addr %s2013, 4
          %s2015 = scalar_lea.vmem [#allocation8], %s2014
          %2016 = dma.done %s2012, 64
        $region116: #{encoder_forward.1} parent=111 // pred_fallthru
          _
        // Predicated region
        $region117: #{encoder_forward.1} parent=111 // pred_check
          %p2017 = pneg %p402
        $region118: #{encoder_forward.1} parent=111 // pred_check_branch
          %2019 = sbr.rel (%p2017) target = $region120
        $region119: #{encoder_forward.1} parent=111 // pred_region
          %s2020 = sand.u32 %s44, 1
          %s2021 = scalar_lea.sflag [#allocation11], %s2020
          %s2022 = sand.u32 %s387, 1
          %s2023 = smul.addr %s2022, 4
          %s2024 = scalar_lea.vmem [#allocation10], %s2023
          %2025 = dma.done %s2021, 64
        $region120: #{encoder_forward.1} parent=111 // pred_fallthru
          _
        // Predicated region
        $region121: #{encoder_forward.1} parent=111 // pred_check
          %p2026 = pneg %p430
        $region122: #{encoder_forward.1} parent=111 // pred_check_branch
          %2028 = sbr.rel (%p2026) target = $region124
        $region123: #{encoder_forward.1} parent=111 // pred_region
          %s2029 = sand.u32 %s44, 1
          %s2030 = scalar_lea.sflag [#allocation11], %s2029
          %s2031 = sand.u32 %s415, 1
          %s2032 = smul.addr %s2031, 4
          %s2033 = scalar_lea.vmem [#allocation12], %s2032
          %2034 = dma.done %s2030, 64
        $region124: #{encoder_forward.1} parent=111 // pred_fallthru
          _
        // Predicated region
        $region125: #{encoder_forward.1} parent=111 // pred_check
          %p2035 = pneg %p458
        $region126: #{encoder_forward.1} parent=111 // pred_check_branch
          %2037 = sbr.rel (%p2035) target = $region128
        $region127: #{encoder_forward.1} parent=111 // pred_region
          %s2038 = sand.u32 %s443, 1
          %s2039 = scalar_lea.sflag [#allocation14], %s2038
          %s2040 = sand.u32 %s443, 1
          %s2041 = scalar_lea.vmem [#allocation13], %s2040
          %2042 = dma.done %s2039, 16
        $region128: #{encoder_forward.1} parent=111 // pred_fallthru
          _
      $region112: #{encoder_forward.1} parent=5 // pred_fallthru
        _
    $region6: #{encoder_forward.1} parent=1 // loop_footer
      %s42 = sadd.s32 1, %s38
    $region7: #{encoder_forward.1} parent=1 // loop_footer_branch
      %37 = sbr.rel target = $region3
    $region8: #{encoder_forward.1} parent=1 // loop_exit
      _
    %2043 = vsyncpa [#allocation9], 1
    %s2044 = scalar_lea.sflag [#allocation9], 1
    %2045 = vsyncpa %s2044, 1
    %2046 = vsyncpa [#allocation11], 1
    %s2047 = scalar_lea.sflag [#allocation11], 1
    %2048 = vsyncpa %s2047, 1
    %2049 = vsyncpa [#allocation14], 1
    %s2050 = scalar_lea.sflag [#allocation14], 1
    %2051 = vsyncpa %s2050, 1

</llo_original>
